<compile_context>
chip_gen: v7x
topology: tpu7x:2x2x1
jax: 0.10.0
libtpu: 0.0.40
codegen_flags: <defaults>
</compile_context>

<pallas_src>
import functools

import jax
import jax.numpy as jnp
from jax.experimental import pallas as pl
from jax.experimental.pallas import tpu as pltpu

LN_EPS = 1e-5


def _cond_select_kernel(x_ref, w_ref, b_ref, lnw_ref, lnb_ref, gd_ref,
                        out0_ref, out1_ref, *, h_dim, inv_tau, hard):
    # ---- Linear: (tb, in_dim) @ (in_dim, 2*h_dim) + bias (MXU, f32 accumulate) ----
    h = jnp.dot(x_ref[...], w_ref[...],
                preferred_element_type=jnp.float32,
                precision=jax.lax.Precision.HIGHEST)
    h = h + b_ref[...].astype(jnp.float32)            # (1, 2h) bias broadcast over rows

    # ---- LayerNorm over the full 2*h_dim feature axis (two-pass: no cancellation) ----
    mean = jnp.mean(h, axis=-1, keepdims=True)
    hc = h - mean
    var = jnp.mean(hc * hc, axis=-1, keepdims=True)
    h = hc * jax.lax.rsqrt(var + LN_EPS)
    h = h * lnw_ref[...].astype(jnp.float32) + lnb_ref[...].astype(jnp.float32)

    # ---- ReLU ----
    h = jnp.maximum(h, 0.0)

    # ---- Gumbel-softmax over dim=1 of the (B, 2, h_dim) view ----
    # Only the logit difference matters for a 2-way softmax, so no full-width
    # logits tensor is materialized; gd_ref already holds g[:, :h] - g[:, h:].
    a = h[:, :h_dim]
    b = h[:, h_dim:]
    d = (a - b + gd_ref[...].astype(jnp.float32)) * inv_tau

    if hard:
        # Straight-through forward value: one-hot of argmax along dim=1
        # (ties -> slice 0, like torch.argmax).
        s0 = jnp.where(d >= 0.0, 1.0, 0.0)
    else:
        # Exact 2-way softmax via a numerically-stable sigmoid (one exp, one divide).
        e = jnp.exp(-jnp.abs(d))
        s0 = jnp.where(d >= 0.0, 1.0, e) / (1.0 + e)
    s1 = 1.0 - s0

    # Two lane-dense (tb, h_dim) stores — h_dim is a multiple of 128 (unmasked vst).
    out0_ref[...] = s0.astype(out0_ref.dtype)
    out1_ref[...] = s1.astype(out1_ref.dtype)


def _round_up(n, m):
    return -(-n // m) * m


def _pick_tile_b(B, in_dim, h_dim, *, max_tile=512,
                 vmem_budget_bytes=36 * 1024 * 1024, itemsize=4):
    """Batch tile: multiple of 8, capped so double-buffered per-row traffic plus the
    resident (grid-invariant) W / bias / LN operands fit a VMEM budget that is safe on
    every generation (v7x has only 64 MiB physical). max_tile=512 keeps each grid step
    in the >=85%-of-HBM-roofline regime while leaving multiple parallel steps for
    megacore sharding at large B."""
    fixed = itemsize * 2 * h_dim * (in_dim + 3)          # W + bias + LN w/b (resident once)
    per_row = itemsize * (in_dim + 3 * h_dim) * 2        # x + g_delta + 2 outs, double-buffered
    cap = (vmem_budget_bytes - fixed) // max(per_row, 1)
    cap = max(8, (cap // 8) * 8)
    tb = min(max_tile, cap, _round_up(B, 8))
    return max(8, (tb // 8) * 8)


def conditional_selection(x, w_t, b, ln_w, ln_b, g_delta, *, h_dim,
                          tau=1.0, hard=False, tile_b=None):
    """Forward of ConditionalSelection.

    x:       (B, in_dim)
    w_t:     (in_dim, 2*h_dim)  Linear weight, pre-transposed (PyTorch stores (out, in))
    b:       (2*h_dim,)         Linear bias
    ln_w/b:  (2*h_dim,)         LayerNorm affine params
    g_delta: (B, h_dim)         gumbel-noise difference g[:, :h] - g[:, h:] (a Logistic(0,1)
                                sample); a 2-way softmax only depends on this difference.
    Returns (x0, x1), each (B, h_dim).
    """
    B, in_dim = x.shape
    two_h = 2 * h_dim
    if h_dim % 128 != 0:
        raise ValueError("h_dim must be a multiple of 128 (lane-dense half-splits/stores)")
    assert w_t.shape == (in_dim, two_h)
    assert g_delta.shape == (B, h_dim)

    tb = _pick_tile_b(B, in_dim, h_dim) if tile_b is None else int(tile_b)
    assert tb % 8 == 0
    grid = (pl.cdiv(B, tb),)   # masked partial tail tile handles ragged B

    # 2D (1, 2*h_dim) parameter rows for a clean lane layout.
    b2 = b.reshape(1, two_h)
    lnw2 = ln_w.reshape(1, two_h)
    lnb2 = ln_b.reshape(1, two_h)

    kernel = functools.partial(_cond_select_kernel, h_dim=h_dim,
                               inv_tau=float(1.0 / tau), hard=bool(hard))

    out_dtype = x.dtype
    x0, x1 = pl.pallas_call(
        kernel,
        out_shape=(jax.ShapeDtypeStruct((B, h_dim), out_dtype),
                   jax.ShapeDtypeStruct((B, h_dim), out_dtype)),
        grid_spec=pltpu.PrefetchScalarGridSpec(
            num_scalar_prefetch=0,
            grid=grid,
            in_specs=[
                pl.BlockSpec((tb, in_dim), lambda i: (i, 0)),     # x tile
                pl.BlockSpec((in_dim, two_h), lambda i: (0, 0)),  # W (grid-invariant)
                pl.BlockSpec((1, two_h), lambda i: (0, 0)),       # bias
                pl.BlockSpec((1, two_h), lambda i: (0, 0)),       # LN weight
                pl.BlockSpec((1, two_h), lambda i: (0, 0)),       # LN bias
                pl.BlockSpec((tb, h_dim), lambda i: (i, 0)),      # gumbel-delta tile
            ],
            out_specs=[
                pl.BlockSpec((tb, h_dim), lambda i: (i, 0)),      # slice 0
                pl.BlockSpec((tb, h_dim), lambda i: (i, 0)),      # slice 1
            ],
        ),
        compiler_params=pltpu.CompilerParams(
            dimension_semantics=("parallel",),
            vmem_limit_bytes=48 * 1024 * 1024),
    )(x, w_t, b2, lnw2, lnb2, g_delta)
    return x0, x1


if __name__ == "__main__":
    # Small shapes consistent with the module: Linear(in_dim, 2*h_dim), LayerNorm, ReLU.
    B, in_dim, h_dim = 64, 64, 128
    two_h = 2 * h_dim

    key = jax.random.PRNGKey(0)
    kx, kw, kb, kg, kx2, kg2 = jax.random.split(key, 6)

    x = jax.random.normal(kx, (B, in_dim), dtype=jnp.float32)

    # Deterministic "PyTorch-like" init: Linear U(-1/sqrt(in), 1/sqrt(in)), LN weight=1/bias=0.
    bound = 1.0 / (in_dim ** 0.5)
    w = jax.random.uniform(kw, (two_h, in_dim), minval=-bound, maxval=bound,
                           dtype=jnp.float32)           # PyTorch layout (out, in)
    w_t = w.T                                           # kernel wants (in, out)
    bias = jax.random.uniform(kb, (two_h,), minval=-bound, maxval=bound, dtype=jnp.float32)
    ln_w = jnp.ones((two_h,), jnp.float32)
    ln_b = jnp.zeros((two_h,), jnp.float32)

    # Gumbel noise g = -log(-log(U)) (matches F.gumbel_softmax's noise model). The kernel
    # only needs the pairwise difference; a production caller can sample Logistic(0,1)
    # directly at (B, h_dim) and skip the full-width tensor entirely.
    u = jax.random.uniform(kg, (B, two_h), minval=1e-6, maxval=1.0 - 1e-6, dtype=jnp.float32)
    gumbel = -jnp.log(-jnp.log(u))
    g_delta = gumbel[:, :h_dim] - gumbel[:, h_dim:]

    tau = 0.7
    x0, x1 = conditional_selection(x, w_t, bias, ln_w, ln_b, g_delta,
                                   h_dim=h_dim, tau=tau, hard=False)
    h0, h1 = conditional_selection(x, w_t, bias, ln_w, ln_b, g_delta,
                                   h_dim=h_dim, tau=tau, hard=True)
    jax.block_until_ready((x0, x1, h0, h1))

    # Pure-JAX reference (same gumbel noise, same matmul precision).
    def reference(xr, gr):
        hr = jnp.dot(xr, w_t, precision=jax.lax.Precision.HIGHEST) + bias
        mu = hr.mean(-1, keepdims=True)
        var = ((hr - mu) ** 2).mean(-1, keepdims=True)
        hr = (hr - mu) / jnp.sqrt(var + LN_EPS) * ln_w + ln_b
        hr = jnp.maximum(hr, 0.0)
        logits = ((hr + gr) / tau).reshape(xr.shape[0], 2, h_dim)
        soft = jax.nn.softmax(logits, axis=1)
        d = logits[:, 0, :] - logits[:, 1, :]
        return soft[:, 0, :], soft[:, 1, :], d

    r0, r1, d_ref = reference(x, gumbel)
    assert jnp.allclose(x0, r0, atol=5e-3), "soft slice-0 mismatch"
    assert jnp.allclose(x1, r1, atol=5e-3), "soft slice-1 mismatch"
    assert jnp.allclose(x0 + x1, 1.0, atol=1e-6), "soft probs don't sum to 1"

    # Hard path: exact one-hot where the decision is numerically decisive (ties -> slice 0).
    hr0 = (d_ref >= 0.0).astype(jnp.float32)
    decisive = jnp.abs(d_ref) > 5e-3
    assert bool(jnp.all((h0 == 0.0) | (h0 == 1.0))), "hard output not one-hot"
    assert bool(jnp.all(jnp.where(decisive, h0 == hr0, True))), "hard slice-0 mismatch"
    assert jnp.array_equal(h1, 1.0 - h0), "hard slices don't sum to 1"

    # Ragged batch: cdiv grid with a masked partial tail tile (B=40, tb=16 -> 3 steps).
    B2 = 40
    x2 = jax.random.normal(kx2, (B2, in_dim), dtype=jnp.float32)
    u2 = jax.random.uniform(kg2, (B2, two_h), minval=1e-6, maxval=1.0 - 1e-6, dtype=jnp.float32)
    g2 = -jnp.log(-jnp.log(u2))
    gd2 = g2[:, :h_dim] - g2[:, h_dim:]
    y0, y1 = conditional_selection(x2, w_t, bias, ln_w, ln_b, gd2,
                                   h_dim=h_dim, tau=tau, hard=False, tile_b=16)
    jax.block_until_ready((y0, y1))
    q0, q1, _ = reference(x2, g2)
    assert jnp.allclose(y0, q0, atol=5e-3), "ragged soft slice-0 mismatch"
    assert jnp.allclose(y1, q1, atol=5e-3), "ragged soft slice-1 mismatch"

    print("KERNEL_OK")
</pallas_src>

<mosaic_0001>
module attributes {stable_mosaic.version = 11 : i64} {
  func.func @_cond_select_kernel(%arg0: i32, %arg1: memref<64x64xf32, #tpu.memory_space<vmem>>, %arg2: memref<64x256xf32, #tpu.memory_space<vmem>>, %arg3: memref<1x256xf32, #tpu.memory_space<vmem>>, %arg4: memref<1x256xf32, #tpu.memory_space<vmem>>, %arg5: memref<1x256xf32, #tpu.memory_space<vmem>>, %arg6: memref<64x128xf32, #tpu.memory_space<vmem>>, %arg7: memref<64x128xf32, #tpu.memory_space<vmem>>, %arg8: memref<64x128xf32, #tpu.memory_space<vmem>>) attributes {dimension_semantics = [#tpu.dimension_semantics<parallel>], iteration_bounds = array<i64: 1>, scalar_prefetch = 0 : i64, scratch_operands = 0 : i64, tpu.core_type = #tpu.core_type<tc>, window_params = [{transform_indices = @transform_0, window_bounds = array<i64: 64, 64>}, {pipeline_mode = #tpu.pipeline_mode<synchronous>, transform_indices = @transform_1, window_bounds = array<i64: 64, 256>}, {pipeline_mode = #tpu.pipeline_mode<synchronous>, transform_indices = @transform_2, window_bounds = array<i64: 1, 256>}, {pipeline_mode = #tpu.pipeline_mode<synchronous>, transform_indices = @transform_3, window_bounds = array<i64: 1, 256>}, {pipeline_mode = #tpu.pipeline_mode<synchronous>, transform_indices = @transform_4, window_bounds = array<i64: 1, 256>}, {transform_indices = @transform_5, window_bounds = array<i64: 64, 128>}, {transform_indices = @transform_6, window_bounds = array<i64: 64, 128>}, {transform_indices = @transform_7, window_bounds = array<i64: 64, 128>}]} {
    %c0 = arith.constant 0 : index
    %c0_0 = arith.constant 0 : index
    %0 = vector.load %arg1[%c0, %c0_0] : memref<64x64xf32, #tpu.memory_space<vmem>>, vector<64x64xf32>
    %c0_1 = arith.constant 0 : index
    %c0_2 = arith.constant 0 : index
    %1 = vector.load %arg2[%c0_1, %c0_2] : memref<64x256xf32, #tpu.memory_space<vmem>>, vector<64x256xf32>
    %cst = arith.constant dense<0.000000e+00> : vector<64x256xf32>
    %2 = tpu.matmul %0, %1, %cst {dimension_numbers = #tpu.dot_dimension_numbers<[1], [0], [0], [1], [0, 0, 1, 1], [], []>, precision = #tpu.contract_precision<fp32>} : vector<64x64xf32>, vector<64x256xf32>, vector<64x256xf32> -> vector<64x256xf32>
    %c0_3 = arith.constant 0 : index
    %c0_4 = arith.constant 0 : index
    %3 = vector.load %arg3[%c0_3, %c0_4] : memref<1x256xf32, #tpu.memory_space<vmem>>, vector<1x256xf32>
    %4 = vector.broadcast %3 : vector<1x256xf32> to vector<64x256xf32>
    %5 = arith.addf %2, %4 : vector<64x256xf32>
    %cst_5 = arith.constant dense<0.000000e+00> : vector<64xf32>
    %6 = vector.multi_reduction <add>, %5, %cst_5 [1] : vector<64x256xf32> to vector<64xf32>
    %7 = vector.shape_cast %6 : vector<64xf32> to vector<64x1xf32>
    %cst_6 = arith.constant 2.560000e+02 : f32
    %8 = vector.broadcast %cst_6 : f32 to vector<64x1xf32>
    %9 = arith.divf %7, %8 : vector<64x1xf32>
    %10 = vector.broadcast %9 : vector<64x1xf32> to vector<64x256xf32>
    %11 = arith.subf %5, %10 : vector<64x256xf32>
    %12 = arith.mulf %11, %11 : vector<64x256xf32>
    %cst_7 = arith.constant dense<0.000000e+00> : vector<64xf32>
    %13 = vector.multi_reduction <add>, %12, %cst_7 [1] : vector<64x256xf32> to vector<64xf32>
    %14 = vector.shape_cast %13 : vector<64xf32> to vector<64x1xf32>
    %cst_8 = arith.constant 2.560000e+02 : f32
    %15 = vector.broadcast %cst_8 : f32 to vector<64x1xf32>
    %16 = arith.divf %14, %15 : vector<64x1xf32>
    %cst_9 = arith.constant 9.99999974E-6 : f32
    %17 = vector.broadcast %cst_9 : f32 to vector<64x1xf32>
    %18 = arith.addf %16, %17 : vector<64x1xf32>
    %19 = math.rsqrt %18 : vector<64x1xf32>
    %20 = vector.broadcast %19 : vector<64x1xf32> to vector<64x256xf32>
    %21 = arith.mulf %11, %20 : vector<64x256xf32>
    %c0_10 = arith.constant 0 : index
    %c0_11 = arith.constant 0 : index
    %22 = vector.load %arg4[%c0_10, %c0_11] : memref<1x256xf32, #tpu.memory_space<vmem>>, vector<1x256xf32>
    %23 = vector.broadcast %22 : vector<1x256xf32> to vector<64x256xf32>
    %24 = arith.mulf %21, %23 : vector<64x256xf32>
    %c0_12 = arith.constant 0 : index
    %c0_13 = arith.constant 0 : index
    %25 = vector.load %arg5[%c0_12, %c0_13] : memref<1x256xf32, #tpu.memory_space<vmem>>, vector<1x256xf32>
    %26 = vector.broadcast %25 : vector<1x256xf32> to vector<64x256xf32>
    %27 = arith.addf %24, %26 : vector<64x256xf32>
    %cst_14 = arith.constant 0.000000e+00 : f32
    %28 = vector.broadcast %cst_14 : f32 to vector<64x256xf32>
    %29 = arith.maximumf %27, %28 : vector<64x256xf32>
    %30 = vector.extract_strided_slice %29 {offsets = [0, 0], sizes = [64, 128], strides = [1, 1]} : vector<64x256xf32> to vector<64x128xf32>
    %31 = vector.extract_strided_slice %29 {offsets = [0, 128], sizes = [64, 128], strides = [1, 1]} : vector<64x256xf32> to vector<64x128xf32>
    %32 = arith.subf %30, %31 : vector<64x128xf32>
    %c0_15 = arith.constant 0 : index
    %c0_16 = arith.constant 0 : index
    %33 = vector.load %arg6[%c0_15, %c0_16] : memref<64x128xf32, #tpu.memory_space<vmem>>, vector<64x128xf32>
    %34 = arith.addf %32, %33 : vector<64x128xf32>
    %cst_17 = arith.constant 1.42857146 : f32
    %35 = vector.broadcast %cst_17 : f32 to vector<64x128xf32>
    %36 = arith.mulf %34, %35 : vector<64x128xf32>
    %37 = math.absf %36 : vector<64x128xf32>
    %cst_18 = arith.constant 0.000000e+00 : f32
    %38 = vector.broadcast %cst_18 : f32 to vector<64x128xf32>
    %39 = arith.subf %38, %37 : vector<64x128xf32>
    %40 = math.exp %39 : vector<64x128xf32>
    %cst_19 = arith.constant 0.000000e+00 : f32
    %41 = vector.broadcast %cst_19 : f32 to vector<64x128xf32>
    %42 = arith.cmpf oge, %36, %41 : vector<64x128xf32>
    %cst_20 = arith.constant 1.000000e+00 : f32
    %43 = vector.broadcast %cst_20 : f32 to vector<64x128xf32>
    %44 = arith.select %42, %43, %40 : vector<64x128xi1>, vector<64x128xf32>
    %cst_21 = arith.constant 1.000000e+00 : f32
    %45 = vector.broadcast %cst_21 : f32 to vector<64x128xf32>
    %46 = arith.addf %45, %40 : vector<64x128xf32>
    %47 = arith.divf %44, %46 : vector<64x128xf32>
    %cst_22 = arith.constant 1.000000e+00 : f32
    %48 = vector.broadcast %cst_22 : f32 to vector<64x128xf32>
    %49 = arith.subf %48, %47 : vector<64x128xf32>
    %c0_23 = arith.constant 0 : index
    %c0_24 = arith.constant 0 : index
    %50 = vector.load %arg7[%c0_23, %c0_24] : memref<64x128xf32, #tpu.memory_space<vmem>>, vector<64x128xf32>
    tpu.vector_store %arg7[%c0_23, %c0_24], %47 {strides = array<i32>} : memref<64x128xf32, #tpu.memory_space<vmem>>, vector<64x128xf32>,
    %c0_25 = arith.constant 0 : index
    %c0_26 = arith.constant 0 : index
    %51 = vector.load %arg8[%c0_25, %c0_26] : memref<64x128xf32, #tpu.memory_space<vmem>>, vector<64x128xf32>
    tpu.vector_store %arg8[%c0_25, %c0_26], %49 {strides = array<i32>} : memref<64x128xf32, #tpu.memory_space<vmem>>, vector<64x128xf32>,
    return
  }
  func.func @transform_0(%arg0: i32) -> (i32, i32) {
    %c0_i32 = arith.constant 0 : i32
    %c0_i32_0 = arith.constant 0 : i32
    return %arg0, %c0_i32 : i32, i32
  }
  func.func @transform_1(%arg0: i32) -> (i32, i32) {
    %c0_i32 = arith.constant 0 : i32
    %c0_i32_0 = arith.constant 0 : i32
    %c0_i32_1 = arith.constant 0 : i32
    return %c0_i32, %c0_i32_0 : i32, i32
  }
  func.func @transform_2(%arg0: i32) -> (i32, i32) {
    %c0_i32 = arith.constant 0 : i32
    %c0_i32_0 = arith.constant 0 : i32
    %c0_i32_1 = arith.constant 0 : i32
    return %c0_i32, %c0_i32_0 : i32, i32
  }
  func.func @transform_3(%arg0: i32) -> (i32, i32) {
    %c0_i32 = arith.constant 0 : i32
    %c0_i32_0 = arith.constant 0 : i32
    %c0_i32_1 = arith.constant 0 : i32
    return %c0_i32, %c0_i32_0 : i32, i32
  }
  func.func @transform_4(%arg0: i32) -> (i32, i32) {
    %c0_i32 = arith.constant 0 : i32
    %c0_i32_0 = arith.constant 0 : i32
    %c0_i32_1 = arith.constant 0 : i32
    return %c0_i32, %c0_i32_0 : i32, i32
  }
  func.func @transform_5(%arg0: i32) -> (i32, i32) {
    %c0_i32 = arith.constant 0 : i32
    %c0_i32_0 = arith.constant 0 : i32
    return %arg0, %c0_i32 : i32, i32
  }
  func.func @transform_6(%arg0: i32) -> (i32, i32) {
    %c0_i32 = arith.constant 0 : i32
    %c0_i32_0 = arith.constant 0 : i32
    return %arg0, %c0_i32 : i32, i32
  }
  func.func @transform_7(%arg0: i32) -> (i32, i32) {
    %c0_i32 = arith.constant 0 : i32
    %c0_i32_0 = arith.constant 0 : i32
    return %arg0, %c0_i32 : i32, i32
  }
}

</mosaic_0001>

<llo_original>
// kernel: tpu_custom_call.1
$region0: #{tpu_custom_call.1}
  #allocation0 [shape = 'u32[]', space=smem, size = 0x4, offset = 0x4, fixed_abs, tag = 'smem constant byte address 0x4 - core index']
  #allocation1 [shape = 'u32[144,128]{1,0:T(1,128)}', space=vmem, size = 0x12000, scoped, tag = 'internal scratch']
  %s0 = inlined_call_operand.hbm [shape: f32[64,64], index: 0, kind: input, shape index: {}]
  %s1 = inlined_call_operand.hbm [shape: f32[64,256], index: 1, kind: input, shape index: {}]
  %s2 = inlined_call_operand.vmem [shape: f32[1,256], index: 2, kind: input, shape index: {}]
  %s3 = inlined_call_operand.vmem [shape: f32[1,256], index: 3, kind: input, shape index: {}]
  %s4 = inlined_call_operand.vmem [shape: f32[1,256], index: 4, kind: input, shape index: {}]
  %s5 = inlined_call_operand.hbm [shape: f32[64,128], index: 5, kind: input, shape index: {}]
  %s6 = inlined_call_operand.hbm [shape: f32[64,128], index: 6, kind: output, shape index: {0}]
  %s7 = inlined_call_operand.hbm [shape: f32[64,128], index: 7, kind: output, shape index: {1}]
  %8 = xla_tuple %s6, %s7
  %s9 = sld [smem:[#allocation0]]
  $region54: #{tpu_custom_call.1} parent=0
    _
  %s11 = ssub.s32 1, %s9
  %s12 = scalar_select 0, %s11, %s9
  $region1: #{tpu_custom_call.1} parent=0
    #allocation2 [shape = 'u8[32768]{0}', space=vmem, size = 0x8000, scoped, tag = 'input window, operand 0, single buffered']
    #allocation3 [shape = 's32[1]{0}', space=sflag, size = 0x4, scoped, tag = 'scoped memory for tpu_custom_call.1']
    #allocation4 [shape = 's32[1]{0}', space=sflag, size = 0x4, scoped, tag = 'scoped memory for tpu_custom_call.1']
    #allocation5 [shape = 'u8[65536]{0}', space=vmem, size = 0x10000, scoped, tag = 'input window, operand 1, single buffered']
    #allocation6 [shape = 's32[1]{0}', space=sflag, size = 0x4, scoped, tag = 'scoped memory for tpu_custom_call.1']
    #allocation7 [shape = 'u8[32768]{0}', space=vmem, size = 0x8000, scoped, tag = 'input window, operand 5, single buffered']
    #allocation8 [shape = 'u8[32768]{0}', space=vmem, size = 0x8000, scoped, tag = 'output window, operand 0, single buffered']
    #allocation9 [shape = 'u8[32768]{0}', space=vmem, size = 0x8000, scoped, tag = 'output window, operand 1, single buffered']
    #allocation10 [shape = 's32[1]{0}', space=sflag, size = 0x4, scoped, tag = 'scoped memory for tpu_custom_call.1']
    %13 = vsyncpa [#allocation3], 0
    %14 = vsyncpa [#allocation6], 0
    %15 = vsyncpa [#allocation4], 0
    %16 = vsyncpa [#allocation10], 0
    // Predicated region
    $region2: #{tpu_custom_call.1} parent=1 // pred_check
      _
    $region3: #{tpu_custom_call.1} parent=1 // pred_check_branch
      %18 = sbr.rel (0) target = $region5
    $region4: #{tpu_custom_call.1} parent=1 // pred_region
      %s20 = ssub.s32 1024, 1024
      %21 = vsyncadd [#allocation3], %s20
      %s22 = sshll.u32 [#allocation2], 4
      %s23 = int_to_ptr.vmem [resolvable:$true] %s22
      %28 = dma.hbm_to_vmem [thread:$0]  %s0, 1024, %s23, [#allocation3], 128, 128, 8
    $region5: #{tpu_custom_call.1} parent=1 // pred_fallthru
      _
    // Predicated region
    $region6: #{tpu_custom_call.1} parent=1 // pred_check
      _
    $region7: #{tpu_custom_call.1} parent=1 // pred_check_branch
      %30 = sbr.rel (0) target = $region9
    $region8: #{tpu_custom_call.1} parent=1 // pred_region
      %s32 = ssub.s32 2048, 2048
      %33 = vsyncadd [#allocation6], %s32
      %s34 = sshll.u32 [#allocation5], 4
      %s35 = int_to_ptr.vmem [resolvable:$true] %s34
      %40 = dma.hbm_to_vmem [thread:$0]  %s1, 2048, %s35, [#allocation6], 256, 256, 16
    $region9: #{tpu_custom_call.1} parent=1 // pred_fallthru
      _
    // Predicated region
    $region10: #{tpu_custom_call.1} parent=1 // pred_check
      _
    $region11: #{tpu_custom_call.1} parent=1 // pred_check_branch
      %42 = sbr.rel (0) target = $region13
    $region12: #{tpu_custom_call.1} parent=1 // pred_region
      _
    $region13: #{tpu_custom_call.1} parent=1 // pred_fallthru
      _
    // Predicated region
    $region14: #{tpu_custom_call.1} parent=1 // pred_check
      _
    $region15: #{tpu_custom_call.1} parent=1 // pred_check_branch
      %44 = sbr.rel (0) target = $region17
    $region16: #{tpu_custom_call.1} parent=1 // pred_region
      _
    $region17: #{tpu_custom_call.1} parent=1 // pred_fallthru
      _
    // Predicated region
    $region18: #{tpu_custom_call.1} parent=1 // pred_check
      _
    $region19: #{tpu_custom_call.1} parent=1 // pred_check_branch
      %46 = sbr.rel (0) target = $region21
    $region20: #{tpu_custom_call.1} parent=1 // pred_region
      _
    $region21: #{tpu_custom_call.1} parent=1 // pred_fallthru
      _
    // Predicated region
    $region22: #{tpu_custom_call.1} parent=1 // pred_check
      _
    $region23: #{tpu_custom_call.1} parent=1 // pred_check_branch
      %48 = sbr.rel (0) target = $region25
    $region24: #{tpu_custom_call.1} parent=1 // pred_region
      %s50 = ssub.s32 1024, 1024
      %51 = vsyncadd [#allocation6], %s50
      %s52 = sshll.u32 [#allocation7], 4
      %s53 = int_to_ptr.vmem [resolvable:$true] %s52
      %58 = dma.hbm_to_vmem [thread:$0]  %s5, 1024, %s53, [#allocation6], 128, 128, 8
    $region25: #{tpu_custom_call.1} parent=1 // pred_fallthru
      _
    // Predicated region
    $region26: #{tpu_custom_call.1} parent=1 // pred_check
      _
    $region27: #{tpu_custom_call.1} parent=1 // pred_check_branch
      %60 = sbr.rel (0) target = $region29
    $region28: #{tpu_custom_call.1} parent=1 // pred_region
      %61 = dma.done [#allocation3], 1024
    $region29: #{tpu_custom_call.1} parent=1 // pred_fallthru
      _
    // Predicated region
    $region30: #{tpu_custom_call.1} parent=1 // pred_check
      _
    $region31: #{tpu_custom_call.1} parent=1 // pred_check_branch
      %63 = sbr.rel (0) target = $region33
    $region32: #{tpu_custom_call.1} parent=1 // pred_region
      %64 = dma.done [#allocation6], 2048
    $region33: #{tpu_custom_call.1} parent=1 // pred_fallthru
      _
    // Predicated region
    $region34: #{tpu_custom_call.1} parent=1 // pred_check
      _
    $region35: #{tpu_custom_call.1} parent=1 // pred_check_branch
      %66 = sbr.rel (0) target = $region37
    $region36: #{tpu_custom_call.1} parent=1 // pred_region
      %67 = dma.done [#allocation6], 1024
    $region37: #{tpu_custom_call.1} parent=1 // pred_fallthru
      _
    %v68 = vld [vmem:[#allocation2] sm:$0xff]
    %v69 = vld [vmem:[#allocation2 + $0x8] sm:$0xff]
    %v70 = vld [vmem:[#allocation2 + $0x10] sm:$0xff]
    %v71 = vld [vmem:[#allocation2 + $0x18] sm:$0xff]
    %v72 = vld [vmem:[#allocation2 + $0x20] sm:$0xff]
    %v73 = vld [vmem:[#allocation2 + $0x28] sm:$0xff]
    %v74 = vld [vmem:[#allocation2 + $0x30] sm:$0xff]
    %v75 = vld [vmem:[#allocation2 + $0x38] sm:$0xff]
    %v76 = vld [vmem:[#allocation5] sm:$0xff]
    %v77 = vld [vmem:[#allocation5 + $0x8] sm:$0xff]
    %v78 = vld [vmem:[#allocation5 + $0x10] sm:$0xff]
    %v79 = vld [vmem:[#allocation5 + $0x18] sm:$0xff]
    %v80 = vld [vmem:[#allocation5 + $0x20] sm:$0xff]
    %v81 = vld [vmem:[#allocation5 + $0x28] sm:$0xff]
    %v82 = vld [vmem:[#allocation5 + $0x30] sm:$0xff]
    %v83 = vld [vmem:[#allocation5 + $0x38] sm:$0xff]
    %v84 = vld [vmem:[#allocation5 + $0x40] sm:$0xff]
    %v85 = vld [vmem:[#allocation5 + $0x48] sm:$0xff]
    %v86 = vld [vmem:[#allocation5 + $0x50] sm:$0xff]
    %v87 = vld [vmem:[#allocation5 + $0x58] sm:$0xff]
    %v88 = vld [vmem:[#allocation5 + $0x60] sm:$0xff]
    %v89 = vld [vmem:[#allocation5 + $0x68] sm:$0xff]
    %v90 = vld [vmem:[#allocation5 + $0x70] sm:$0xff]
    %v91 = vld [vmem:[#allocation5 + $0x78] sm:$0xff]
    %v92 = vld [vmem:[%s2] sm:$0x3]
    %v94 = vlaneseq
    %v95 = vshrl.u32 %v94, 7
    %v96 = vsub.s32 0, %v95
    %v97 = vrot.slane %v92, %v96
    %v98 = vlaneseq
    %v99 = vshrl.u32 %v98, 7
    %v100 = vsub.s32 1, %v99
    %v101 = vrot.slane %v92, %v100
    %vm104 = vcmask 523264
    %v106 = vsel %vm104, %v68, 0
    %v109 = vsel %vm104, %v69, 0
    %v112 = vsel %vm104, %v70, 0
    %v115 = vsel %vm104, %v71, 0
    %v118 = vsel %vm104, %v72, 0
    %v121 = vsel %vm104, %v73, 0
    %v124 = vsel %vm104, %v74, 0
    %v127 = vsel %vm104, %v75, 0
    %v129 = vand.u32 %v77, 4294901760
    %130 = vmatprep.subr.mxu0 %v129
    %v131 = vand.u32 %v76, 4294901760
    %132 = vmatpush1.msra.mxu0 %v131
    %v133 = vand.u32 %v79, 4294901760
    %134 = vmatprep.subr.mxu0 %v133
    %v135 = vand.u32 %v78, 4294901760
    %136 = vmatpush1.msra.mxu0 %v135
    %v137 = vand.u32 %v81, 4294901760
    %138 = vmatprep.subr.mxu0 %v137
    %v139 = vand.u32 %v80, 4294901760
    %140 = vmatpush1.msra.mxu0 %v139
    %v141 = vand.u32 %v83, 4294901760
    %142 = vmatprep.subr.mxu0 %v141
    %v143 = vand.u32 %v82, 4294901760
    %144 = vmatpush1.msra.mxu0 %v143
    %v145 = vand.u32 %v85, 4294901760
    %146 = vmatprep.subr.mxu0 %v145
    %v147 = vand.u32 %v84, 4294901760
    %148 = vmatpush1.msra.mxu0 %v147
    %v149 = vand.u32 %v87, 4294901760
    %150 = vmatprep.subr.mxu0 %v149
    %v151 = vand.u32 %v86, 4294901760
    %152 = vmatpush1.msra.mxu0 %v151
    %v153 = vand.u32 %v89, 4294901760
    %154 = vmatprep.subr.mxu0 %v153
    %v155 = vand.u32 %v88, 4294901760
    %156 = vmatpush1.msra.mxu0 %v155
    %v157 = vand.u32 %v91, 4294901760
    %158 = vmatprep.subr.mxu0 %v157
    %v159 = vand.u32 %v90, 4294901760
    %160 = vmatpush1.msra.mxu0 %v159
    %161 = vmatprep.subr.mxu0 0.0
    %162 = vmatpush1.msra.mxu0 0.0
    %163 = vmatprep.subr.mxu0 0.0
    %164 = vmatpush1.msra.mxu0 0.0
    %165 = vmatprep.subr.mxu0 0.0
    %166 = vmatpush1.msra.mxu0 0.0
    %167 = vmatprep.subr.mxu0 0.0
    %168 = vmatpush1.msra.mxu0 0.0
    %169 = vmatprep.subr.mxu0 0.0
    %170 = vmatpush1.msra.mxu0 0.0
    %171 = vmatprep.subr.mxu0 0.0
    %172 = vmatpush1.msra.mxu0 0.0
    %173 = vmatprep.subr.mxu0 0.0
    %174 = vmatpush1.msra.mxu0 0.0
    %175 = vmatprep.subr.mxu0 0.0
    %176 = vmatpush1.msra.mxu0 0.0
    %177 = vmatprep.subr.mxu0 0.0
    %178 = vmatpush1.msra.mxu0 0.0
    %179 = vmatprep.subr.mxu0 0.0
    %180 = vmatpush1.msra.mxu0 0.0
    %181 = vmatprep.subr.mxu0 0.0
    %182 = vmatpush1.msra.mxu0 0.0
    %183 = vmatprep.subr.mxu0 0.0
    %184 = vmatpush1.msra.mxu0 0.0
    %185 = vmatprep.subr.mxu0 0.0
    %186 = vmatpush1.msra.mxu0 0.0
    %187 = vmatprep.subr.mxu0 0.0
    %188 = vmatpush1.msra.mxu0 0.0
    %189 = vmatprep.subr.mxu0 0.0
    %190 = vmatpush1.msra.mxu0 0.0
    %191 = vmatprep.subr.mxu0 0.0
    %192 = vmatpush1.msra.mxu0 0.0
    %193 = vmatprep.subr.mxu0 0.0
    %194 = vmatpush1.msra.mxu0 0.0
    %195 = vmatprep.subr.mxu0 0.0
    %196 = vmatpush1.msra.mxu0 0.0
    %197 = vmatprep.subr.mxu0 0.0
    %198 = vmatpush1.msra.mxu0 0.0
    %199 = vmatprep.subr.mxu0 0.0
    %200 = vmatpush1.msra.mxu0 0.0
    %201 = vmatprep.subr.mxu0 0.0
    %202 = vmatpush1.msra.mxu0 0.0
    %203 = vmatprep.subr.mxu0 0.0
    %204 = vmatpush1.msra.mxu0 0.0
    %205 = vmatprep.subr.mxu0 0.0
    %206 = vmatpush1.msra.mxu0 0.0
    %207 = vmatprep.subr.mxu0 0.0
    %208 = vmatpush1.msra.mxu0 0.0
    %209 = vmatprep.mubr.f32.mxu0 0.0
    %v210 = vand.u32 %v106, 4294901760
    %v211 = vsub.f32 %v106, %v210
    %v212 = vand.u32 %v211, 4294901760
    %v213 = vsub.f32 %v211, %v212
    %v214 = vand.u32 %v213, 4294901760
    %215 = vmatmul.mubr.f32.gmra.mrb[0].mxu0 %v214
    %v216 = vpop.f32.mrb[0].mxu0
    %v217 = vadd.f32 %v97, %v216
    %v218 = vpop.f32.mrb[0].mxu0
    %v219 = vadd.f32 %v101, %v218
    %220 = vmatprep.mubr.f32.mxu0 0.0
    %v221 = vand.u32 %v109, 4294901760
    %v222 = vsub.f32 %v109, %v221
    %v223 = vand.u32 %v222, 4294901760
    %v224 = vsub.f32 %v222, %v223
    %v225 = vand.u32 %v224, 4294901760
    %226 = vmatmul.mubr.f32.gmra.mrb[0].mxu0 %v225
    %v227 = vpop.f32.mrb[0].mxu0
    %v228 = vadd.f32 %v97, %v227
    %v229 = vpop.f32.mrb[0].mxu0
    %v230 = vadd.f32 %v101, %v229
    %231 = vmatprep.mubr.f32.mxu0 0.0
    %v232 = vand.u32 %v112, 4294901760
    %v233 = vsub.f32 %v112, %v232
    %v234 = vand.u32 %v233, 4294901760
    %v235 = vsub.f32 %v233, %v234
    %v236 = vand.u32 %v235, 4294901760
    %237 = vmatmul.mubr.f32.gmra.mrb[0].mxu0 %v236
    %v238 = vpop.f32.mrb[0].mxu0
    %v239 = vadd.f32 %v97, %v238
    %v240 = vpop.f32.mrb[0].mxu0
    %v241 = vadd.f32 %v101, %v240
    %242 = vmatprep.mubr.f32.mxu0 0.0
    %v243 = vand.u32 %v115, 4294901760
    %v244 = vsub.f32 %v115, %v243
    %v245 = vand.u32 %v244, 4294901760
    %v246 = vsub.f32 %v244, %v245
    %v247 = vand.u32 %v246, 4294901760
    %248 = vmatmul.mubr.f32.gmra.mrb[0].mxu0 %v247
    %v249 = vpop.f32.mrb[0].mxu0
    %v250 = vadd.f32 %v97, %v249
    %v251 = vpop.f32.mrb[0].mxu0
    %v252 = vadd.f32 %v101, %v251
    %253 = vmatprep.mubr.f32.mxu0 0.0
    %v254 = vand.u32 %v118, 4294901760
    %v255 = vsub.f32 %v118, %v254
    %v256 = vand.u32 %v255, 4294901760
    %v257 = vsub.f32 %v255, %v256
    %v258 = vand.u32 %v257, 4294901760
    %259 = vmatmul.mubr.f32.gmra.mrb[0].mxu0 %v258
    %v260 = vpop.f32.mrb[0].mxu0
    %v261 = vadd.f32 %v97, %v260
    %v262 = vpop.f32.mrb[0].mxu0
    %v263 = vadd.f32 %v101, %v262
    %264 = vmatprep.mubr.f32.mxu0 0.0
    %v265 = vand.u32 %v121, 4294901760
    %v266 = vsub.f32 %v121, %v265
    %v267 = vand.u32 %v266, 4294901760
    %v268 = vsub.f32 %v266, %v267
    %v269 = vand.u32 %v268, 4294901760
    %270 = vmatmul.mubr.f32.gmra.mrb[0].mxu0 %v269
    %v271 = vpop.f32.mrb[0].mxu0
    %v272 = vadd.f32 %v97, %v271
    %v273 = vpop.f32.mrb[0].mxu0
    %v274 = vadd.f32 %v101, %v273
    %275 = vmatprep.mubr.f32.mxu0 0.0
    %v276 = vand.u32 %v124, 4294901760
    %v277 = vsub.f32 %v124, %v276
    %v278 = vand.u32 %v277, 4294901760
    %v279 = vsub.f32 %v277, %v278
    %v280 = vand.u32 %v279, 4294901760
    %281 = vmatmul.mubr.f32.gmra.mrb[0].mxu0 %v280
    %v282 = vpop.f32.mrb[0].mxu0
    %v283 = vadd.f32 %v97, %v282
    %v284 = vpop.f32.mrb[0].mxu0
    %v285 = vadd.f32 %v101, %v284
    %286 = vmatprep.mubr.f32.mxu0 0.0
    %v287 = vand.u32 %v127, 4294901760
    %v288 = vsub.f32 %v127, %v287
    %v289 = vand.u32 %v288, 4294901760
    %v290 = vsub.f32 %v288, %v289
    %v291 = vand.u32 %v290, 4294901760
    %292 = vmatmul.mubr.f32.gmra.mrb[0].mxu0 %v291
    %v293 = vpop.f32.mrb[0].mxu0
    %v294 = vadd.f32 %v97, %v293
    %v295 = vpop.f32.mrb[0].mxu0
    %v296 = vadd.f32 %v101, %v295
    %297 = vdwg.mxu0
    %v298 = vand.u32 %v77, 4294901760
    %v299 = vsub.f32 %v77, %v298
    %v300 = vand.u32 %v299, 4294901760
    %v301 = vsub.f32 %v299, %v300
    %v302 = vand.u32 %v301, 4294901760
    %303 = vmatprep.subr.mxu0 %v302
    %v304 = vand.u32 %v76, 4294901760
    %v305 = vsub.f32 %v76, %v304
    %v306 = vand.u32 %v305, 4294901760
    %v307 = vsub.f32 %v305, %v306
    %v308 = vand.u32 %v307, 4294901760
    %309 = vmatpush1.msra.mxu0 %v308
    %v310 = vand.u32 %v79, 4294901760
    %v311 = vsub.f32 %v79, %v310
    %v312 = vand.u32 %v311, 4294901760
    %v313 = vsub.f32 %v311, %v312
    %v314 = vand.u32 %v313, 4294901760
    %315 = vmatprep.subr.mxu0 %v314
    %v316 = vand.u32 %v78, 4294901760
    %v317 = vsub.f32 %v78, %v316
    %v318 = vand.u32 %v317, 4294901760
    %v319 = vsub.f32 %v317, %v318
    %v320 = vand.u32 %v319, 4294901760
    %321 = vmatpush1.msra.mxu0 %v320
    %v322 = vand.u32 %v81, 4294901760
    %v323 = vsub.f32 %v81, %v322
    %v324 = vand.u32 %v323, 4294901760
    %v325 = vsub.f32 %v323, %v324
    %v326 = vand.u32 %v325, 4294901760
    %327 = vmatprep.subr.mxu0 %v326
    %v328 = vand.u32 %v80, 4294901760
    %v329 = vsub.f32 %v80, %v328
    %v330 = vand.u32 %v329, 4294901760
    %v331 = vsub.f32 %v329, %v330
    %v332 = vand.u32 %v331, 4294901760
    %333 = vmatpush1.msra.mxu0 %v332
    %v334 = vand.u32 %v83, 4294901760
    %v335 = vsub.f32 %v83, %v334
    %v336 = vand.u32 %v335, 4294901760
    %v337 = vsub.f32 %v335, %v336
    %v338 = vand.u32 %v337, 4294901760
    %339 = vmatprep.subr.mxu0 %v338
    %v340 = vand.u32 %v82, 4294901760
    %v341 = vsub.f32 %v82, %v340
    %v342 = vand.u32 %v341, 4294901760
    %v343 = vsub.f32 %v341, %v342
    %v344 = vand.u32 %v343, 4294901760
    %345 = vmatpush1.msra.mxu0 %v344
    %v346 = vand.u32 %v85, 4294901760
    %v347 = vsub.f32 %v85, %v346
    %v348 = vand.u32 %v347, 4294901760
    %v349 = vsub.f32 %v347, %v348
    %v350 = vand.u32 %v349, 4294901760
    %351 = vmatprep.subr.mxu0 %v350
    %v352 = vand.u32 %v84, 4294901760
    %v353 = vsub.f32 %v84, %v352
    %v354 = vand.u32 %v353, 4294901760
    %v355 = vsub.f32 %v353, %v354
    %v356 = vand.u32 %v355, 4294901760
    %357 = vmatpush1.msra.mxu0 %v356
    %v358 = vand.u32 %v87, 4294901760
    %v359 = vsub.f32 %v87, %v358
    %v360 = vand.u32 %v359, 4294901760
    %v361 = vsub.f32 %v359, %v360
    %v362 = vand.u32 %v361, 4294901760
    %363 = vmatprep.subr.mxu0 %v362
    %v364 = vand.u32 %v86, 4294901760
    %v365 = vsub.f32 %v86, %v364
    %v366 = vand.u32 %v365, 4294901760
    %v367 = vsub.f32 %v365, %v366
    %v368 = vand.u32 %v367, 4294901760
    %369 = vmatpush1.msra.mxu0 %v368
    %v370 = vand.u32 %v89, 4294901760
    %v371 = vsub.f32 %v89, %v370
    %v372 = vand.u32 %v371, 4294901760
    %v373 = vsub.f32 %v371, %v372
    %v374 = vand.u32 %v373, 4294901760
    %375 = vmatprep.subr.mxu0 %v374
    %v376 = vand.u32 %v88, 4294901760
    %v377 = vsub.f32 %v88, %v376
    %v378 = vand.u32 %v377, 4294901760
    %v379 = vsub.f32 %v377, %v378
    %v380 = vand.u32 %v379, 4294901760
    %381 = vmatpush1.msra.mxu0 %v380
    %v382 = vand.u32 %v91, 4294901760
    %v383 = vsub.f32 %v91, %v382
    %v384 = vand.u32 %v383, 4294901760
    %v385 = vsub.f32 %v383, %v384
    %v386 = vand.u32 %v385, 4294901760
    %387 = vmatprep.subr.mxu0 %v386
    %v388 = vand.u32 %v90, 4294901760
    %v389 = vsub.f32 %v90, %v388
    %v390 = vand.u32 %v389, 4294901760
    %v391 = vsub.f32 %v389, %v390
    %v392 = vand.u32 %v391, 4294901760
    %393 = vmatpush1.msra.mxu0 %v392
    %394 = vmatprep.subr.mxu0 0.0
    %395 = vmatpush1.msra.mxu0 0.0
    %396 = vmatprep.subr.mxu0 0.0
    %397 = vmatpush1.msra.mxu0 0.0
    %398 = vmatprep.subr.mxu0 0.0
    %399 = vmatpush1.msra.mxu0 0.0
    %400 = vmatprep.subr.mxu0 0.0
    %401 = vmatpush1.msra.mxu0 0.0
    %402 = vmatprep.subr.mxu0 0.0
    %403 = vmatpush1.msra.mxu0 0.0
    %404 = vmatprep.subr.mxu0 0.0
    %405 = vmatpush1.msra.mxu0 0.0
    %406 = vmatprep.subr.mxu0 0.0
    %407 = vmatpush1.msra.mxu0 0.0
    %408 = vmatprep.subr.mxu0 0.0
    %409 = vmatpush1.msra.mxu0 0.0
    %410 = vmatprep.subr.mxu0 0.0
    %411 = vmatpush1.msra.mxu0 0.0
    %412 = vmatprep.subr.mxu0 0.0
    %413 = vmatpush1.msra.mxu0 0.0
    %414 = vmatprep.subr.mxu0 0.0
    %415 = vmatpush1.msra.mxu0 0.0
    %416 = vmatprep.subr.mxu0 0.0
    %417 = vmatpush1.msra.mxu0 0.0
    %418 = vmatprep.subr.mxu0 0.0
    %419 = vmatpush1.msra.mxu0 0.0
    %420 = vmatprep.subr.mxu0 0.0
    %421 = vmatpush1.msra.mxu0 0.0
    %422 = vmatprep.subr.mxu0 0.0
    %423 = vmatpush1.msra.mxu0 0.0
    %424 = vmatprep.subr.mxu0 0.0
    %425 = vmatpush1.msra.mxu0 0.0
    %426 = vmatprep.subr.mxu0 0.0
    %427 = vmatpush1.msra.mxu0 0.0
    %428 = vmatprep.subr.mxu0 0.0
    %429 = vmatpush1.msra.mxu0 0.0
    %430 = vmatprep.subr.mxu0 0.0
    %431 = vmatpush1.msra.mxu0 0.0
    %432 = vmatprep.subr.mxu0 0.0
    %433 = vmatpush1.msra.mxu0 0.0
    %434 = vmatprep.subr.mxu0 0.0
    %435 = vmatpush1.msra.mxu0 0.0
    %436 = vmatprep.subr.mxu0 0.0
    %437 = vmatpush1.msra.mxu0 0.0
    %438 = vmatprep.subr.mxu0 0.0
    %439 = vmatpush1.msra.mxu0 0.0
    %440 = vmatprep.subr.mxu0 0.0
    %441 = vmatpush1.msra.mxu0 0.0
    %442 = vmatprep.mubr.f32.mxu0 0.0
    %v443 = vand.u32 %v106, 4294901760
    %444 = vmatmul.mubr.f32.gmra.mrb[0].mxu0 %v443
    %v445 = vpop.f32.mrb[0].mxu0
    %v446 = vadd.f32 %v217, %v445
    %v447 = vpop.f32.mrb[0].mxu0
    %v448 = vadd.f32 %v219, %v447
    %449 = vmatprep.mubr.f32.mxu0 0.0
    %v450 = vand.u32 %v109, 4294901760
    %451 = vmatmul.mubr.f32.gmra.mrb[0].mxu0 %v450
    %v452 = vpop.f32.mrb[0].mxu0
    %v453 = vadd.f32 %v228, %v452
    %v454 = vpop.f32.mrb[0].mxu0
    %v455 = vadd.f32 %v230, %v454
    %456 = vmatprep.mubr.f32.mxu0 0.0
    %v457 = vand.u32 %v112, 4294901760
    %458 = vmatmul.mubr.f32.gmra.mrb[0].mxu0 %v457
    %v459 = vpop.f32.mrb[0].mxu0
    %v460 = vadd.f32 %v239, %v459
    %v461 = vpop.f32.mrb[0].mxu0
    %v462 = vadd.f32 %v241, %v461
    %463 = vmatprep.mubr.f32.mxu0 0.0
    %v464 = vand.u32 %v115, 4294901760
    %465 = vmatmul.mubr.f32.gmra.mrb[0].mxu0 %v464
    %v466 = vpop.f32.mrb[0].mxu0
    %v467 = vadd.f32 %v250, %v466
    %v468 = vpop.f32.mrb[0].mxu0
    %v469 = vadd.f32 %v252, %v468
    %470 = vmatprep.mubr.f32.mxu0 0.0
    %v471 = vand.u32 %v118, 4294901760
    %472 = vmatmul.mubr.f32.gmra.mrb[0].mxu0 %v471
    %v473 = vpop.f32.mrb[0].mxu0
    %v474 = vadd.f32 %v261, %v473
    %v475 = vpop.f32.mrb[0].mxu0
    %v476 = vadd.f32 %v263, %v475
    %477 = vmatprep.mubr.f32.mxu0 0.0
    %v478 = vand.u32 %v121, 4294901760
    %479 = vmatmul.mubr.f32.gmra.mrb[0].mxu0 %v478
    %v480 = vpop.f32.mrb[0].mxu0
    %v481 = vadd.f32 %v272, %v480
    %v482 = vpop.f32.mrb[0].mxu0
    %v483 = vadd.f32 %v274, %v482
    %484 = vmatprep.mubr.f32.mxu0 0.0
    %v485 = vand.u32 %v124, 4294901760
    %486 = vmatmul.mubr.f32.gmra.mrb[0].mxu0 %v485
    %v487 = vpop.f32.mrb[0].mxu0
    %v488 = vadd.f32 %v283, %v487
    %v489 = vpop.f32.mrb[0].mxu0
    %v490 = vadd.f32 %v285, %v489
    %491 = vmatprep.mubr.f32.mxu0 0.0
    %v492 = vand.u32 %v127, 4294901760
    %493 = vmatmul.mubr.f32.gmra.mrb[0].mxu0 %v492
    %v494 = vpop.f32.mrb[0].mxu0
    %v495 = vadd.f32 %v294, %v494
    %v496 = vpop.f32.mrb[0].mxu0
    %v497 = vadd.f32 %v296, %v496
    %498 = vdwg.mxu0
    %v499 = vand.u32 %v77, 4294901760
    %v500 = vsub.f32 %v77, %v499
    %501 = vmatprep.subr.mxu0 %v500
    %v502 = vand.u32 %v76, 4294901760
    %v503 = vsub.f32 %v76, %v502
    %504 = vmatpush1.msra.mxu0 %v503
    %v505 = vand.u32 %v79, 4294901760
    %v506 = vsub.f32 %v79, %v505
    %507 = vmatprep.subr.mxu0 %v506
    %v508 = vand.u32 %v78, 4294901760
    %v509 = vsub.f32 %v78, %v508
    %510 = vmatpush1.msra.mxu0 %v509
    %v511 = vand.u32 %v81, 4294901760
    %v512 = vsub.f32 %v81, %v511
    %513 = vmatprep.subr.mxu0 %v512
    %v514 = vand.u32 %v80, 4294901760
    %v515 = vsub.f32 %v80, %v514
    %516 = vmatpush1.msra.mxu0 %v515
    %v517 = vand.u32 %v83, 4294901760
    %v518 = vsub.f32 %v83, %v517
    %519 = vmatprep.subr.mxu0 %v518
    %v520 = vand.u32 %v82, 4294901760
    %v521 = vsub.f32 %v82, %v520
    %522 = vmatpush1.msra.mxu0 %v521
    %v523 = vand.u32 %v85, 4294901760
    %v524 = vsub.f32 %v85, %v523
    %525 = vmatprep.subr.mxu0 %v524
    %v526 = vand.u32 %v84, 4294901760
    %v527 = vsub.f32 %v84, %v526
    %528 = vmatpush1.msra.mxu0 %v527
    %v529 = vand.u32 %v87, 4294901760
    %v530 = vsub.f32 %v87, %v529
    %531 = vmatprep.subr.mxu0 %v530
    %v532 = vand.u32 %v86, 4294901760
    %v533 = vsub.f32 %v86, %v532
    %534 = vmatpush1.msra.mxu0 %v533
    %v535 = vand.u32 %v89, 4294901760
    %v536 = vsub.f32 %v89, %v535
    %537 = vmatprep.subr.mxu0 %v536
    %v538 = vand.u32 %v88, 4294901760
    %v539 = vsub.f32 %v88, %v538
    %540 = vmatpush1.msra.mxu0 %v539
    %v541 = vand.u32 %v91, 4294901760
    %v542 = vsub.f32 %v91, %v541
    %543 = vmatprep.subr.mxu0 %v542
    %v544 = vand.u32 %v90, 4294901760
    %v545 = vsub.f32 %v90, %v544
    %546 = vmatpush1.msra.mxu0 %v545
    %547 = vmatprep.subr.mxu0 0.0
    %548 = vmatpush1.msra.mxu0 0.0
    %549 = vmatprep.subr.mxu0 0.0
    %550 = vmatpush1.msra.mxu0 0.0
    %551 = vmatprep.subr.mxu0 0.0
    %552 = vmatpush1.msra.mxu0 0.0
    %553 = vmatprep.subr.mxu0 0.0
    %554 = vmatpush1.msra.mxu0 0.0
    %555 = vmatprep.subr.mxu0 0.0
    %556 = vmatpush1.msra.mxu0 0.0
    %557 = vmatprep.subr.mxu0 0.0
    %558 = vmatpush1.msra.mxu0 0.0
    %559 = vmatprep.subr.mxu0 0.0
    %560 = vmatpush1.msra.mxu0 0.0
    %561 = vmatprep.subr.mxu0 0.0
    %562 = vmatpush1.msra.mxu0 0.0
    %563 = vmatprep.subr.mxu0 0.0
    %564 = vmatpush1.msra.mxu0 0.0
    %565 = vmatprep.subr.mxu0 0.0
    %566 = vmatpush1.msra.mxu0 0.0
    %567 = vmatprep.subr.mxu0 0.0
    %568 = vmatpush1.msra.mxu0 0.0
    %569 = vmatprep.subr.mxu0 0.0
    %570 = vmatpush1.msra.mxu0 0.0
    %571 = vmatprep.subr.mxu0 0.0
    %572 = vmatpush1.msra.mxu0 0.0
    %573 = vmatprep.subr.mxu0 0.0
    %574 = vmatpush1.msra.mxu0 0.0
    %575 = vmatprep.subr.mxu0 0.0
    %576 = vmatpush1.msra.mxu0 0.0
    %577 = vmatprep.subr.mxu0 0.0
    %578 = vmatpush1.msra.mxu0 0.0
    %579 = vmatprep.subr.mxu0 0.0
    %580 = vmatpush1.msra.mxu0 0.0
    %581 = vmatprep.subr.mxu0 0.0
    %582 = vmatpush1.msra.mxu0 0.0
    %583 = vmatprep.subr.mxu0 0.0
    %584 = vmatpush1.msra.mxu0 0.0
    %585 = vmatprep.subr.mxu0 0.0
    %586 = vmatpush1.msra.mxu0 0.0
    %587 = vmatprep.subr.mxu0 0.0
    %588 = vmatpush1.msra.mxu0 0.0
    %589 = vmatprep.subr.mxu0 0.0
    %590 = vmatpush1.msra.mxu0 0.0
    %591 = vmatprep.subr.mxu0 0.0
    %592 = vmatpush1.msra.mxu0 0.0
    %593 = vmatprep.subr.mxu0 0.0
    %594 = vmatpush1.msra.mxu0 0.0
    %595 = vmatprep.mubr.f32.mxu0 0.0
    %v596 = vand.u32 %v106, 4294901760
    %v597 = vsub.f32 %v106, %v596
    %598 = vmatmul.mubr.f32.gmra.mrb[0].mxu0 %v597
    %v599 = vpop.f32.mrb[0].mxu0
    %v600 = vadd.f32 %v446, %v599
    %v601 = vpop.f32.mrb[0].mxu0
    %v602 = vadd.f32 %v448, %v601
    %603 = vmatprep.mubr.f32.mxu0 0.0
    %v604 = vand.u32 %v109, 4294901760
    %v605 = vsub.f32 %v109, %v604
    %606 = vmatmul.mubr.f32.gmra.mrb[0].mxu0 %v605
    %v607 = vpop.f32.mrb[0].mxu0
    %v608 = vadd.f32 %v453, %v607
    %v609 = vpop.f32.mrb[0].mxu0
    %v610 = vadd.f32 %v455, %v609
    %611 = vmatprep.mubr.f32.mxu0 0.0
    %v612 = vand.u32 %v112, 4294901760
    %v613 = vsub.f32 %v112, %v612
    %614 = vmatmul.mubr.f32.gmra.mrb[0].mxu0 %v613
    %v615 = vpop.f32.mrb[0].mxu0
    %v616 = vadd.f32 %v460, %v615
    %v617 = vpop.f32.mrb[0].mxu0
    %v618 = vadd.f32 %v462, %v617
    %619 = vmatprep.mubr.f32.mxu0 0.0
    %v620 = vand.u32 %v115, 4294901760
    %v621 = vsub.f32 %v115, %v620
    %622 = vmatmul.mubr.f32.gmra.mrb[0].mxu0 %v621
    %v623 = vpop.f32.mrb[0].mxu0
    %v624 = vadd.f32 %v467, %v623
    %v625 = vpop.f32.mrb[0].mxu0
    %v626 = vadd.f32 %v469, %v625
    %627 = vmatprep.mubr.f32.mxu0 0.0
    %v628 = vand.u32 %v118, 4294901760
    %v629 = vsub.f32 %v118, %v628
    %630 = vmatmul.mubr.f32.gmra.mrb[0].mxu0 %v629
    %v631 = vpop.f32.mrb[0].mxu0
    %v632 = vadd.f32 %v474, %v631
    %v633 = vpop.f32.mrb[0].mxu0
    %v634 = vadd.f32 %v476, %v633
    %635 = vmatprep.mubr.f32.mxu0 0.0
    %v636 = vand.u32 %v121, 4294901760
    %v637 = vsub.f32 %v121, %v636
    %638 = vmatmul.mubr.f32.gmra.mrb[0].mxu0 %v637
    %v639 = vpop.f32.mrb[0].mxu0
    %v640 = vadd.f32 %v481, %v639
    %v641 = vpop.f32.mrb[0].mxu0
    %v642 = vadd.f32 %v483, %v641
    %643 = vmatprep.mubr.f32.mxu0 0.0
    %v644 = vand.u32 %v124, 4294901760
    %v645 = vsub.f32 %v124, %v644
    %646 = vmatmul.mubr.f32.gmra.mrb[0].mxu0 %v645
    %v647 = vpop.f32.mrb[0].mxu0
    %v648 = vadd.f32 %v488, %v647
    %v649 = vpop.f32.mrb[0].mxu0
    %v650 = vadd.f32 %v490, %v649
    %651 = vmatprep.mubr.f32.mxu0 0.0
    %v652 = vand.u32 %v127, 4294901760
    %v653 = vsub.f32 %v127, %v652
    %654 = vmatmul.mubr.f32.gmra.mrb[0].mxu0 %v653
    %v655 = vpop.f32.mrb[0].mxu0
    %v656 = vadd.f32 %v495, %v655
    %v657 = vpop.f32.mrb[0].mxu0
    %v658 = vadd.f32 %v497, %v657
    %659 = vdwg.mxu0
    %v660 = vand.u32 %v77, 4294901760
    %661 = vmatprep.subr.mxu0 %v660
    %v662 = vand.u32 %v76, 4294901760
    %663 = vmatpush1.msra.mxu0 %v662
    %v664 = vand.u32 %v79, 4294901760
    %665 = vmatprep.subr.mxu0 %v664
    %v666 = vand.u32 %v78, 4294901760
    %667 = vmatpush1.msra.mxu0 %v666
    %v668 = vand.u32 %v81, 4294901760
    %669 = vmatprep.subr.mxu0 %v668
    %v670 = vand.u32 %v80, 4294901760
    %671 = vmatpush1.msra.mxu0 %v670
    %v672 = vand.u32 %v83, 4294901760
    %673 = vmatprep.subr.mxu0 %v672
    %v674 = vand.u32 %v82, 4294901760
    %675 = vmatpush1.msra.mxu0 %v674
    %v676 = vand.u32 %v85, 4294901760
    %677 = vmatprep.subr.mxu0 %v676
    %v678 = vand.u32 %v84, 4294901760
    %679 = vmatpush1.msra.mxu0 %v678
    %v680 = vand.u32 %v87, 4294901760
    %681 = vmatprep.subr.mxu0 %v680
    %v682 = vand.u32 %v86, 4294901760
    %683 = vmatpush1.msra.mxu0 %v682
    %v684 = vand.u32 %v89, 4294901760
    %685 = vmatprep.subr.mxu0 %v684
    %v686 = vand.u32 %v88, 4294901760
    %687 = vmatpush1.msra.mxu0 %v686
    %v688 = vand.u32 %v91, 4294901760
    %689 = vmatprep.subr.mxu0 %v688
    %v690 = vand.u32 %v90, 4294901760
    %691 = vmatpush1.msra.mxu0 %v690
    %692 = vmatprep.subr.mxu0 0.0
    %693 = vmatpush1.msra.mxu0 0.0
    %694 = vmatprep.subr.mxu0 0.0
    %695 = vmatpush1.msra.mxu0 0.0
    %696 = vmatprep.subr.mxu0 0.0
    %697 = vmatpush1.msra.mxu0 0.0
    %698 = vmatprep.subr.mxu0 0.0
    %699 = vmatpush1.msra.mxu0 0.0
    %700 = vmatprep.subr.mxu0 0.0
    %701 = vmatpush1.msra.mxu0 0.0
    %702 = vmatprep.subr.mxu0 0.0
    %703 = vmatpush1.msra.mxu0 0.0
    %704 = vmatprep.subr.mxu0 0.0
    %705 = vmatpush1.msra.mxu0 0.0
    %706 = vmatprep.subr.mxu0 0.0
    %707 = vmatpush1.msra.mxu0 0.0
    %708 = vmatprep.subr.mxu0 0.0
    %709 = vmatpush1.msra.mxu0 0.0
    %710 = vmatprep.subr.mxu0 0.0
    %711 = vmatpush1.msra.mxu0 0.0
    %712 = vmatprep.subr.mxu0 0.0
    %713 = vmatpush1.msra.mxu0 0.0
    %714 = vmatprep.subr.mxu0 0.0
    %715 = vmatpush1.msra.mxu0 0.0
    %716 = vmatprep.subr.mxu0 0.0
    %717 = vmatpush1.msra.mxu0 0.0
    %718 = vmatprep.subr.mxu0 0.0
    %719 = vmatpush1.msra.mxu0 0.0
    %720 = vmatprep.subr.mxu0 0.0
    %721 = vmatpush1.msra.mxu0 0.0
    %722 = vmatprep.subr.mxu0 0.0
    %723 = vmatpush1.msra.mxu0 0.0
    %724 = vmatprep.subr.mxu0 0.0
    %725 = vmatpush1.msra.mxu0 0.0
    %726 = vmatprep.subr.mxu0 0.0
    %727 = vmatpush1.msra.mxu0 0.0
    %728 = vmatprep.subr.mxu0 0.0
    %729 = vmatpush1.msra.mxu0 0.0
    %730 = vmatprep.subr.mxu0 0.0
    %731 = vmatpush1.msra.mxu0 0.0
    %732 = vmatprep.subr.mxu0 0.0
    %733 = vmatpush1.msra.mxu0 0.0
    %734 = vmatprep.subr.mxu0 0.0
    %735 = vmatpush1.msra.mxu0 0.0
    %736 = vmatprep.subr.mxu0 0.0
    %737 = vmatpush1.msra.mxu0 0.0
    %738 = vmatprep.subr.mxu0 0.0
    %739 = vmatpush1.msra.mxu0 0.0
    %740 = vmatprep.mubr.f32.mxu0 0.0
    %v741 = vand.u32 %v106, 4294901760
    %v742 = vsub.f32 %v106, %v741
    %v743 = vand.u32 %v742, 4294901760
    %744 = vmatmul.mubr.f32.gmra.mrb[0].mxu0 %v743
    %v745 = vpop.f32.mrb[0].mxu0
    %v746 = vadd.f32 %v600, %v745
    %v747 = vpop.f32.mrb[0].mxu0
    %v748 = vadd.f32 %v602, %v747
    %749 = vmatprep.mubr.f32.mxu0 0.0
    %v750 = vand.u32 %v109, 4294901760
    %v751 = vsub.f32 %v109, %v750
    %v752 = vand.u32 %v751, 4294901760
    %753 = vmatmul.mubr.f32.gmra.mrb[0].mxu0 %v752
    %v754 = vpop.f32.mrb[0].mxu0
    %v755 = vadd.f32 %v608, %v754
    %v756 = vpop.f32.mrb[0].mxu0
    %v757 = vadd.f32 %v610, %v756
    %758 = vmatprep.mubr.f32.mxu0 0.0
    %v759 = vand.u32 %v112, 4294901760
    %v760 = vsub.f32 %v112, %v759
    %v761 = vand.u32 %v760, 4294901760
    %762 = vmatmul.mubr.f32.gmra.mrb[0].mxu0 %v761
    %v763 = vpop.f32.mrb[0].mxu0
    %v764 = vadd.f32 %v616, %v763
    %v765 = vpop.f32.mrb[0].mxu0
    %v766 = vadd.f32 %v618, %v765
    %767 = vmatprep.mubr.f32.mxu0 0.0
    %v768 = vand.u32 %v115, 4294901760
    %v769 = vsub.f32 %v115, %v768
    %v770 = vand.u32 %v769, 4294901760
    %771 = vmatmul.mubr.f32.gmra.mrb[0].mxu0 %v770
    %v772 = vpop.f32.mrb[0].mxu0
    %v773 = vadd.f32 %v624, %v772
    %v774 = vpop.f32.mrb[0].mxu0
    %v775 = vadd.f32 %v626, %v774
    %776 = vmatprep.mubr.f32.mxu0 0.0
    %v777 = vand.u32 %v118, 4294901760
    %v778 = vsub.f32 %v118, %v777
    %v779 = vand.u32 %v778, 4294901760
    %780 = vmatmul.mubr.f32.gmra.mrb[0].mxu0 %v779
    %v781 = vpop.f32.mrb[0].mxu0
    %v782 = vadd.f32 %v632, %v781
    %v783 = vpop.f32.mrb[0].mxu0
    %v784 = vadd.f32 %v634, %v783
    %785 = vmatprep.mubr.f32.mxu0 0.0
    %v786 = vand.u32 %v121, 4294901760
    %v787 = vsub.f32 %v121, %v786
    %v788 = vand.u32 %v787, 4294901760
    %789 = vmatmul.mubr.f32.gmra.mrb[0].mxu0 %v788
    %v790 = vpop.f32.mrb[0].mxu0
    %v791 = vadd.f32 %v640, %v790
    %v792 = vpop.f32.mrb[0].mxu0
    %v793 = vadd.f32 %v642, %v792
    %794 = vmatprep.mubr.f32.mxu0 0.0
    %v795 = vand.u32 %v124, 4294901760
    %v796 = vsub.f32 %v124, %v795
    %v797 = vand.u32 %v796, 4294901760
    %798 = vmatmul.mubr.f32.gmra.mrb[0].mxu0 %v797
    %v799 = vpop.f32.mrb[0].mxu0
    %v800 = vadd.f32 %v648, %v799
    %v801 = vpop.f32.mrb[0].mxu0
    %v802 = vadd.f32 %v650, %v801
    %803 = vmatprep.mubr.f32.mxu0 0.0
    %v804 = vand.u32 %v127, 4294901760
    %v805 = vsub.f32 %v127, %v804
    %v806 = vand.u32 %v805, 4294901760
    %807 = vmatmul.mubr.f32.gmra.mrb[0].mxu0 %v806
    %v808 = vpop.f32.mrb[0].mxu0
    %v809 = vadd.f32 %v656, %v808
    %v810 = vpop.f32.mrb[0].mxu0
    %v811 = vadd.f32 %v658, %v810
    %812 = vdwg.mxu0
    %v813 = vand.u32 %v77, 4294901760
    %v814 = vsub.f32 %v77, %v813
    %v815 = vand.u32 %v814, 4294901760
    %816 = vmatprep.subr.mxu0 %v815
    %v817 = vand.u32 %v76, 4294901760
    %v818 = vsub.f32 %v76, %v817
    %v819 = vand.u32 %v818, 4294901760
    %820 = vmatpush1.msra.mxu0 %v819
    %v821 = vand.u32 %v79, 4294901760
    %v822 = vsub.f32 %v79, %v821
    %v823 = vand.u32 %v822, 4294901760
    %824 = vmatprep.subr.mxu0 %v823
    %v825 = vand.u32 %v78, 4294901760
    %v826 = vsub.f32 %v78, %v825
    %v827 = vand.u32 %v826, 4294901760
    %828 = vmatpush1.msra.mxu0 %v827
    %v829 = vand.u32 %v81, 4294901760
    %v830 = vsub.f32 %v81, %v829
    %v831 = vand.u32 %v830, 4294901760
    %832 = vmatprep.subr.mxu0 %v831
    %v833 = vand.u32 %v80, 4294901760
    %v834 = vsub.f32 %v80, %v833
    %v835 = vand.u32 %v834, 4294901760
    %836 = vmatpush1.msra.mxu0 %v835
    %v837 = vand.u32 %v83, 4294901760
    %v838 = vsub.f32 %v83, %v837
    %v839 = vand.u32 %v838, 4294901760
    %840 = vmatprep.subr.mxu0 %v839
    %v841 = vand.u32 %v82, 4294901760
    %v842 = vsub.f32 %v82, %v841
    %v843 = vand.u32 %v842, 4294901760
    %844 = vmatpush1.msra.mxu0 %v843
    %v845 = vand.u32 %v85, 4294901760
    %v846 = vsub.f32 %v85, %v845
    %v847 = vand.u32 %v846, 4294901760
    %848 = vmatprep.subr.mxu0 %v847
    %v849 = vand.u32 %v84, 4294901760
    %v850 = vsub.f32 %v84, %v849
    %v851 = vand.u32 %v850, 4294901760
    %852 = vmatpush1.msra.mxu0 %v851
    %v853 = vand.u32 %v87, 4294901760
    %v854 = vsub.f32 %v87, %v853
    %v855 = vand.u32 %v854, 4294901760
    %856 = vmatprep.subr.mxu0 %v855
    %v857 = vand.u32 %v86, 4294901760
    %v858 = vsub.f32 %v86, %v857
    %v859 = vand.u32 %v858, 4294901760
    %860 = vmatpush1.msra.mxu0 %v859
    %v861 = vand.u32 %v89, 4294901760
    %v862 = vsub.f32 %v89, %v861
    %v863 = vand.u32 %v862, 4294901760
    %864 = vmatprep.subr.mxu0 %v863
    %v865 = vand.u32 %v88, 4294901760
    %v866 = vsub.f32 %v88, %v865
    %v867 = vand.u32 %v866, 4294901760
    %868 = vmatpush1.msra.mxu0 %v867
    %v869 = vand.u32 %v91, 4294901760
    %v870 = vsub.f32 %v91, %v869
    %v871 = vand.u32 %v870, 4294901760
    %872 = vmatprep.subr.mxu0 %v871
    %v873 = vand.u32 %v90, 4294901760
    %v874 = vsub.f32 %v90, %v873
    %v875 = vand.u32 %v874, 4294901760
    %876 = vmatpush1.msra.mxu0 %v875
    %877 = vmatprep.subr.mxu0 0.0
    %878 = vmatpush1.msra.mxu0 0.0
    %879 = vmatprep.subr.mxu0 0.0
    %880 = vmatpush1.msra.mxu0 0.0
    %881 = vmatprep.subr.mxu0 0.0
    %882 = vmatpush1.msra.mxu0 0.0
    %883 = vmatprep.subr.mxu0 0.0
    %884 = vmatpush1.msra.mxu0 0.0
    %885 = vmatprep.subr.mxu0 0.0
    %886 = vmatpush1.msra.mxu0 0.0
    %887 = vmatprep.subr.mxu0 0.0
    %888 = vmatpush1.msra.mxu0 0.0
    %889 = vmatprep.subr.mxu0 0.0
    %890 = vmatpush1.msra.mxu0 0.0
    %891 = vmatprep.subr.mxu0 0.0
    %892 = vmatpush1.msra.mxu0 0.0
    %893 = vmatprep.subr.mxu0 0.0
    %894 = vmatpush1.msra.mxu0 0.0
    %895 = vmatprep.subr.mxu0 0.0
    %896 = vmatpush1.msra.mxu0 0.0
    %897 = vmatprep.subr.mxu0 0.0
    %898 = vmatpush1.msra.mxu0 0.0
    %899 = vmatprep.subr.mxu0 0.0
    %900 = vmatpush1.msra.mxu0 0.0
    %901 = vmatprep.subr.mxu0 0.0
    %902 = vmatpush1.msra.mxu0 0.0
    %903 = vmatprep.subr.mxu0 0.0
    %904 = vmatpush1.msra.mxu0 0.0
    %905 = vmatprep.subr.mxu0 0.0
    %906 = vmatpush1.msra.mxu0 0.0
    %907 = vmatprep.subr.mxu0 0.0
    %908 = vmatpush1.msra.mxu0 0.0
    %909 = vmatprep.subr.mxu0 0.0
    %910 = vmatpush1.msra.mxu0 0.0
    %911 = vmatprep.subr.mxu0 0.0
    %912 = vmatpush1.msra.mxu0 0.0
    %913 = vmatprep.subr.mxu0 0.0
    %914 = vmatpush1.msra.mxu0 0.0
    %915 = vmatprep.subr.mxu0 0.0
    %916 = vmatpush1.msra.mxu0 0.0
    %917 = vmatprep.subr.mxu0 0.0
    %918 = vmatpush1.msra.mxu0 0.0
    %919 = vmatprep.subr.mxu0 0.0
    %920 = vmatpush1.msra.mxu0 0.0
    %921 = vmatprep.subr.mxu0 0.0
    %922 = vmatpush1.msra.mxu0 0.0
    %923 = vmatprep.subr.mxu0 0.0
    %924 = vmatpush1.msra.mxu0 0.0
    %925 = vmatprep.mubr.f32.mxu0 0.0
    %v926 = vand.u32 %v106, 4294901760
    %927 = vmatmul.mubr.f32.gmra.mrb[0].mxu0 %v926
    %v928 = vpop.f32.mrb[0].mxu0
    %v929 = vadd.f32 %v746, %v928
    %v930 = vpop.f32.mrb[0].mxu0
    %v931 = vadd.f32 %v748, %v930
    %932 = vmatprep.mubr.f32.mxu0 0.0
    %v933 = vand.u32 %v109, 4294901760
    %934 = vmatmul.mubr.f32.gmra.mrb[0].mxu0 %v933
    %v935 = vpop.f32.mrb[0].mxu0
    %v936 = vadd.f32 %v755, %v935
    %v937 = vpop.f32.mrb[0].mxu0
    %v938 = vadd.f32 %v757, %v937
    %939 = vmatprep.mubr.f32.mxu0 0.0
    %v940 = vand.u32 %v112, 4294901760
    %941 = vmatmul.mubr.f32.gmra.mrb[0].mxu0 %v940
    %v942 = vpop.f32.mrb[0].mxu0
    %v943 = vadd.f32 %v764, %v942
    %v944 = vpop.f32.mrb[0].mxu0
    %v945 = vadd.f32 %v766, %v944
    %946 = vmatprep.mubr.f32.mxu0 0.0
    %v947 = vand.u32 %v115, 4294901760
    %948 = vmatmul.mubr.f32.gmra.mrb[0].mxu0 %v947
    %v949 = vpop.f32.mrb[0].mxu0
    %v950 = vadd.f32 %v773, %v949
    %v951 = vpop.f32.mrb[0].mxu0
    %v952 = vadd.f32 %v775, %v951
    %953 = vmatprep.mubr.f32.mxu0 0.0
    %v954 = vand.u32 %v118, 4294901760
    %955 = vmatmul.mubr.f32.gmra.mrb[0].mxu0 %v954
    %v956 = vpop.f32.mrb[0].mxu0
    %v957 = vadd.f32 %v782, %v956
    %v958 = vpop.f32.mrb[0].mxu0
    %v959 = vadd.f32 %v784, %v958
    %960 = vmatprep.mubr.f32.mxu0 0.0
    %v961 = vand.u32 %v121, 4294901760
    %962 = vmatmul.mubr.f32.gmra.mrb[0].mxu0 %v961
    %v963 = vpop.f32.mrb[0].mxu0
    %v964 = vadd.f32 %v791, %v963
    %v965 = vpop.f32.mrb[0].mxu0
    %v966 = vadd.f32 %v793, %v965
    %967 = vmatprep.mubr.f32.mxu0 0.0
    %v968 = vand.u32 %v124, 4294901760
    %969 = vmatmul.mubr.f32.gmra.mrb[0].mxu0 %v968
    %v970 = vpop.f32.mrb[0].mxu0
    %v971 = vadd.f32 %v800, %v970
    %v972 = vpop.f32.mrb[0].mxu0
    %v973 = vadd.f32 %v802, %v972
    %974 = vmatprep.mubr.f32.mxu0 0.0
    %v975 = vand.u32 %v127, 4294901760
    %976 = vmatmul.mubr.f32.gmra.mrb[0].mxu0 %v975
    %v977 = vpop.f32.mrb[0].mxu0
    %v978 = vadd.f32 %v809, %v977
    %v979 = vpop.f32.mrb[0].mxu0
    %v980 = vadd.f32 %v811, %v979
    %981 = vdwg.mxu0
    %v982 = vand.u32 %v77, 4294901760
    %983 = vmatprep.subr.mxu0 %v982
    %v984 = vand.u32 %v76, 4294901760
    %985 = vmatpush1.msra.mxu0 %v984
    %v986 = vand.u32 %v79, 4294901760
    %987 = vmatprep.subr.mxu0 %v986
    %v988 = vand.u32 %v78, 4294901760
    %989 = vmatpush1.msra.mxu0 %v988
    %v990 = vand.u32 %v81, 4294901760
    %991 = vmatprep.subr.mxu0 %v990
    %v992 = vand.u32 %v80, 4294901760
    %993 = vmatpush1.msra.mxu0 %v992
    %v994 = vand.u32 %v83, 4294901760
    %995 = vmatprep.subr.mxu0 %v994
    %v996 = vand.u32 %v82, 4294901760
    %997 = vmatpush1.msra.mxu0 %v996
    %v998 = vand.u32 %v85, 4294901760
    %999 = vmatprep.subr.mxu0 %v998
    %v1000 = vand.u32 %v84, 4294901760
    %1001 = vmatpush1.msra.mxu0 %v1000
    %v1002 = vand.u32 %v87, 4294901760
    %1003 = vmatprep.subr.mxu0 %v1002
    %v1004 = vand.u32 %v86, 4294901760
    %1005 = vmatpush1.msra.mxu0 %v1004
    %v1006 = vand.u32 %v89, 4294901760
    %1007 = vmatprep.subr.mxu0 %v1006
    %v1008 = vand.u32 %v88, 4294901760
    %1009 = vmatpush1.msra.mxu0 %v1008
    %v1010 = vand.u32 %v91, 4294901760
    %1011 = vmatprep.subr.mxu0 %v1010
    %v1012 = vand.u32 %v90, 4294901760
    %1013 = vmatpush1.msra.mxu0 %v1012
    %1014 = vmatprep.subr.mxu0 0.0
    %1015 = vmatpush1.msra.mxu0 0.0
    %1016 = vmatprep.subr.mxu0 0.0
    %1017 = vmatpush1.msra.mxu0 0.0
    %1018 = vmatprep.subr.mxu0 0.0
    %1019 = vmatpush1.msra.mxu0 0.0
    %1020 = vmatprep.subr.mxu0 0.0
    %1021 = vmatpush1.msra.mxu0 0.0
    %1022 = vmatprep.subr.mxu0 0.0
    %1023 = vmatpush1.msra.mxu0 0.0
    %1024 = vmatprep.subr.mxu0 0.0
    %1025 = vmatpush1.msra.mxu0 0.0
    %1026 = vmatprep.subr.mxu0 0.0
    %1027 = vmatpush1.msra.mxu0 0.0
    %1028 = vmatprep.subr.mxu0 0.0
    %1029 = vmatpush1.msra.mxu0 0.0
    %1030 = vmatprep.subr.mxu0 0.0
    %1031 = vmatpush1.msra.mxu0 0.0
    %1032 = vmatprep.subr.mxu0 0.0
    %1033 = vmatpush1.msra.mxu0 0.0
    %1034 = vmatprep.subr.mxu0 0.0
    %1035 = vmatpush1.msra.mxu0 0.0
    %1036 = vmatprep.subr.mxu0 0.0
    %1037 = vmatpush1.msra.mxu0 0.0
    %1038 = vmatprep.subr.mxu0 0.0
    %1039 = vmatpush1.msra.mxu0 0.0
    %1040 = vmatprep.subr.mxu0 0.0
    %1041 = vmatpush1.msra.mxu0 0.0
    %1042 = vmatprep.subr.mxu0 0.0
    %1043 = vmatpush1.msra.mxu0 0.0
    %1044 = vmatprep.subr.mxu0 0.0
    %1045 = vmatpush1.msra.mxu0 0.0
    %1046 = vmatprep.subr.mxu0 0.0
    %1047 = vmatpush1.msra.mxu0 0.0
    %1048 = vmatprep.subr.mxu0 0.0
    %1049 = vmatpush1.msra.mxu0 0.0
    %1050 = vmatprep.subr.mxu0 0.0
    %1051 = vmatpush1.msra.mxu0 0.0
    %1052 = vmatprep.subr.mxu0 0.0
    %1053 = vmatpush1.msra.mxu0 0.0
    %1054 = vmatprep.subr.mxu0 0.0
    %1055 = vmatpush1.msra.mxu0 0.0
    %1056 = vmatprep.subr.mxu0 0.0
    %1057 = vmatpush1.msra.mxu0 0.0
    %1058 = vmatprep.subr.mxu0 0.0
    %1059 = vmatpush1.msra.mxu0 0.0
    %1060 = vmatprep.subr.mxu0 0.0
    %1061 = vmatpush1.msra.mxu0 0.0
    %1062 = vmatprep.mubr.f32.mxu0 0.0
    %v1063 = vand.u32 %v106, 4294901760
    %1064 = vmatmul.mubr.f32.gmra.mrb[0].mxu0 %v1063
    %v1065 = vpop.f32.mrb[0].mxu0
    %v1066 = vadd.f32 %v929, %v1065
    %v1067 = vpop.f32.mrb[0].mxu0
    %v1068 = vadd.f32 %v931, %v1067
    %1069 = vmatprep.mubr.f32.mxu0 0.0
    %v1070 = vand.u32 %v109, 4294901760
    %1071 = vmatmul.mubr.f32.gmra.mrb[0].mxu0 %v1070
    %v1072 = vpop.f32.mrb[0].mxu0
    %v1073 = vadd.f32 %v936, %v1072
    %v1074 = vpop.f32.mrb[0].mxu0
    %v1075 = vadd.f32 %v938, %v1074
    %1076 = vmatprep.mubr.f32.mxu0 0.0
    %v1077 = vand.u32 %v112, 4294901760
    %1078 = vmatmul.mubr.f32.gmra.mrb[0].mxu0 %v1077
    %v1079 = vpop.f32.mrb[0].mxu0
    %v1080 = vadd.f32 %v943, %v1079
    %v1081 = vpop.f32.mrb[0].mxu0
    %v1082 = vadd.f32 %v945, %v1081
    %1083 = vmatprep.mubr.f32.mxu0 0.0
    %v1084 = vand.u32 %v115, 4294901760
    %1085 = vmatmul.mubr.f32.gmra.mrb[0].mxu0 %v1084
    %v1086 = vpop.f32.mrb[0].mxu0
    %v1087 = vadd.f32 %v950, %v1086
    %v1088 = vpop.f32.mrb[0].mxu0
    %v1089 = vadd.f32 %v952, %v1088
    %1090 = vmatprep.mubr.f32.mxu0 0.0
    %v1091 = vand.u32 %v118, 4294901760
    %1092 = vmatmul.mubr.f32.gmra.mrb[0].mxu0 %v1091
    %v1093 = vpop.f32.mrb[0].mxu0
    %v1094 = vadd.f32 %v957, %v1093
    %v1095 = vpop.f32.mrb[0].mxu0
    %v1096 = vadd.f32 %v959, %v1095
    %1097 = vmatprep.mubr.f32.mxu0 0.0
    %v1098 = vand.u32 %v121, 4294901760
    %1099 = vmatmul.mubr.f32.gmra.mrb[0].mxu0 %v1098
    %v1100 = vpop.f32.mrb[0].mxu0
    %v1101 = vadd.f32 %v964, %v1100
    %v1102 = vpop.f32.mrb[0].mxu0
    %v1103 = vadd.f32 %v966, %v1102
    %1104 = vmatprep.mubr.f32.mxu0 0.0
    %v1105 = vand.u32 %v124, 4294901760
    %1106 = vmatmul.mubr.f32.gmra.mrb[0].mxu0 %v1105
    %v1107 = vpop.f32.mrb[0].mxu0
    %v1108 = vadd.f32 %v971, %v1107
    %v1109 = vpop.f32.mrb[0].mxu0
    %v1110 = vadd.f32 %v973, %v1109
    %1111 = vmatprep.mubr.f32.mxu0 0.0
    %v1112 = vand.u32 %v127, 4294901760
    %1113 = vmatmul.mubr.f32.gmra.mrb[0].mxu0 %v1112
    %v1114 = vpop.f32.mrb[0].mxu0
    %v1115 = vadd.f32 %v978, %v1114
    %v1116 = vpop.f32.mrb[0].mxu0
    %v1117 = vadd.f32 %v980, %v1116
    %1118 = vdwg.mxu0
    %v1119 = vadd.f32 %v1066, %v1068
    %1120 = vadd.xlane.f32.xlu0 %v1119
    %v1121 = vpop.xlane.xlu0 %1120
    %v1122 = vadd.f32 %v1073, %v1075
    %1123 = vadd.xlane.f32.xlu0 %v1122
    %v1124 = vpop.xlane.xlu0 %1123
    %v1125 = vadd.f32 %v1080, %v1082
    %1126 = vadd.xlane.f32.xlu0 %v1125
    %v1127 = vpop.xlane.xlu0 %1126
    %v1128 = vadd.f32 %v1087, %v1089
    %1129 = vadd.xlane.f32.xlu0 %v1128
    %v1130 = vpop.xlane.xlu0 %1129
    %v1131 = vadd.f32 %v1094, %v1096
    %1132 = vadd.xlane.f32.xlu0 %v1131
    %v1133 = vpop.xlane.xlu0 %1132
    %v1134 = vadd.f32 %v1101, %v1103
    %1135 = vadd.xlane.f32.xlu0 %v1134
    %v1136 = vpop.xlane.xlu0 %1135
    %v1137 = vadd.f32 %v1108, %v1110
    %1138 = vadd.xlane.f32.xlu0 %v1137
    %v1139 = vpop.xlane.xlu0 %1138
    %v1140 = vadd.f32 %v1115, %v1117
    %1141 = vadd.xlane.f32.xlu0 %v1140
    %v1142 = vpop.xlane.xlu0 %1141
    %v1143 = vrcp.pop 256.0
    %v1144 = vmul.f32 %v1121, %v1143
    %v1145 = vmul.f32 %v1124, %v1143
    %v1146 = vmul.f32 %v1127, %v1143
    %v1147 = vmul.f32 %v1130, %v1143
    %v1148 = vmul.f32 %v1133, %v1143
    %v1149 = vmul.f32 %v1136, %v1143
    %v1150 = vmul.f32 %v1139, %v1143
    %v1151 = vmul.f32 %v1142, %v1143
    %v1152 = vsub.f32 %v1066, %v1144
    %v1153 = vsub.f32 %v1068, %v1144
    %v1154 = vsub.f32 %v1073, %v1145
    %v1155 = vsub.f32 %v1075, %v1145
    %v1156 = vsub.f32 %v1080, %v1146
    %v1157 = vsub.f32 %v1082, %v1146
    %v1158 = vsub.f32 %v1087, %v1147
    %v1159 = vsub.f32 %v1089, %v1147
    %v1160 = vsub.f32 %v1094, %v1148
    %v1161 = vsub.f32 %v1096, %v1148
    %v1162 = vsub.f32 %v1101, %v1149
    %v1163 = vsub.f32 %v1103, %v1149
    %v1164 = vsub.f32 %v1108, %v1150
    %v1165 = vsub.f32 %v1110, %v1150
    %v1166 = vsub.f32 %v1115, %v1151
    %v1167 = vsub.f32 %v1117, %v1151
    %v1168 = vmul.f32 %v1152, %v1152
    %v1169 = vmul.f32 %v1153, %v1153
    %v1170 = vmul.f32 %v1154, %v1154
    %v1171 = vmul.f32 %v1155, %v1155
    %v1172 = vmul.f32 %v1156, %v1156
    %v1173 = vmul.f32 %v1157, %v1157
    %v1174 = vmul.f32 %v1158, %v1158
    %v1175 = vmul.f32 %v1159, %v1159
    %v1176 = vmul.f32 %v1160, %v1160
    %v1177 = vmul.f32 %v1161, %v1161
    %v1178 = vmul.f32 %v1162, %v1162
    %v1179 = vmul.f32 %v1163, %v1163
    %v1180 = vmul.f32 %v1164, %v1164
    %v1181 = vmul.f32 %v1165, %v1165
    %v1182 = vmul.f32 %v1166, %v1166
    %v1183 = vmul.f32 %v1167, %v1167
    %v1184 = vadd.f32 %v1168, %v1169
    %1185 = vadd.xlane.f32.xlu0 %v1184
    %v1186 = vpop.xlane.xlu0 %1185
    %v1187 = vadd.f32 %v1170, %v1171
    %1188 = vadd.xlane.f32.xlu0 %v1187
    %v1189 = vpop.xlane.xlu0 %1188
    %v1190 = vadd.f32 %v1172, %v1173
    %1191 = vadd.xlane.f32.xlu0 %v1190
    %v1192 = vpop.xlane.xlu0 %1191
    %v1193 = vadd.f32 %v1174, %v1175
    %1194 = vadd.xlane.f32.xlu0 %v1193
    %v1195 = vpop.xlane.xlu0 %1194
    %v1196 = vadd.f32 %v1176, %v1177
    %1197 = vadd.xlane.f32.xlu0 %v1196
    %v1198 = vpop.xlane.xlu0 %1197
    %v1199 = vadd.f32 %v1178, %v1179
    %1200 = vadd.xlane.f32.xlu0 %v1199
    %v1201 = vpop.xlane.xlu0 %1200
    %v1202 = vadd.f32 %v1180, %v1181
    %1203 = vadd.xlane.f32.xlu0 %v1202
    %v1204 = vpop.xlane.xlu0 %1203
    %v1205 = vadd.f32 %v1182, %v1183
    %1206 = vadd.xlane.f32.xlu0 %v1205
    %v1207 = vpop.xlane.xlu0 %1206
    %v1208 = vmul.f32 %v1186, %v1143
    %v1209 = vmul.f32 %v1189, %v1143
    %v1210 = vmul.f32 %v1192, %v1143
    %v1211 = vmul.f32 %v1195, %v1143
    %v1212 = vmul.f32 %v1198, %v1143
    %v1213 = vmul.f32 %v1201, %v1143
    %v1214 = vmul.f32 %v1204, %v1143
    %v1215 = vmul.f32 %v1207, %v1143
    %v1216 = vadd.f32 %v1208, 1e-05
    %v1217 = vadd.f32 %v1209, 1e-05
    %v1218 = vadd.f32 %v1210, 1e-05
    %v1219 = vadd.f32 %v1211, 1e-05
    %v1220 = vadd.f32 %v1212, 1e-05
    %v1221 = vadd.f32 %v1213, 1e-05
    %v1222 = vadd.f32 %v1214, 1e-05
    %v1223 = vadd.f32 %v1215, 1e-05
    %v1224 = vrsqrt.pop %v1216
    %v1225 = vrsqrt.pop %v1217
    %v1226 = vrsqrt.pop %v1218
    %v1227 = vrsqrt.pop %v1219
    %v1228 = vrsqrt.pop %v1220
    %v1229 = vrsqrt.pop %v1221
    %v1230 = vrsqrt.pop %v1222
    %v1231 = vrsqrt.pop %v1223
    %v1232 = vmul.f32 %v1152, %v1224
    %v1233 = vmul.f32 %v1153, %v1224
    %v1234 = vmul.f32 %v1154, %v1225
    %v1235 = vmul.f32 %v1155, %v1225
    %v1236 = vmul.f32 %v1156, %v1226
    %v1237 = vmul.f32 %v1157, %v1226
    %v1238 = vmul.f32 %v1158, %v1227
    %v1239 = vmul.f32 %v1159, %v1227
    %v1240 = vmul.f32 %v1160, %v1228
    %v1241 = vmul.f32 %v1161, %v1228
    %v1242 = vmul.f32 %v1162, %v1229
    %v1243 = vmul.f32 %v1163, %v1229
    %v1244 = vmul.f32 %v1164, %v1230
    %v1245 = vmul.f32 %v1165, %v1230
    %v1246 = vmul.f32 %v1166, %v1231
    %v1247 = vmul.f32 %v1167, %v1231
    %v1248 = vld [vmem:[%s3] sm:$0x3]
    %v1250 = vlaneseq
    %v1251 = vshrl.u32 %v1250, 7
    %v1252 = vsub.s32 0, %v1251
    %v1253 = vrot.slane %v1248, %v1252
    %v1254 = vlaneseq
    %v1255 = vshrl.u32 %v1254, 7
    %v1256 = vsub.s32 1, %v1255
    %v1257 = vrot.slane %v1248, %v1256
    %v1260 = vmul.f32 %v1232, %v1253
    %v1261 = vmul.f32 %v1233, %v1257
    %v1262 = vmul.f32 %v1234, %v1253
    %v1263 = vmul.f32 %v1235, %v1257
    %v1264 = vmul.f32 %v1236, %v1253
    %v1265 = vmul.f32 %v1237, %v1257
    %v1266 = vmul.f32 %v1238, %v1253
    %v1267 = vmul.f32 %v1239, %v1257
    %v1268 = vmul.f32 %v1240, %v1253
    %v1269 = vmul.f32 %v1241, %v1257
    %v1270 = vmul.f32 %v1242, %v1253
    %v1271 = vmul.f32 %v1243, %v1257
    %v1272 = vmul.f32 %v1244, %v1253
    %v1273 = vmul.f32 %v1245, %v1257
    %v1274 = vmul.f32 %v1246, %v1253
    %v1275 = vmul.f32 %v1247, %v1257
    %v1276 = vld [vmem:[%s4] sm:$0x3]
    %v1278 = vlaneseq
    %v1279 = vshrl.u32 %v1278, 7
    %v1280 = vsub.s32 0, %v1279
    %v1281 = vrot.slane %v1276, %v1280
    %v1282 = vlaneseq
    %v1283 = vshrl.u32 %v1282, 7
    %v1284 = vsub.s32 1, %v1283
    %v1285 = vrot.slane %v1276, %v1284
    %v1288 = vadd.f32 %v1260, %v1281
    %v1289 = vadd.f32 %v1261, %v1285
    %v1290 = vadd.f32 %v1262, %v1281
    %v1291 = vadd.f32 %v1263, %v1285
    %v1292 = vadd.f32 %v1264, %v1281
    %v1293 = vadd.f32 %v1265, %v1285
    %v1294 = vadd.f32 %v1266, %v1281
    %v1295 = vadd.f32 %v1267, %v1285
    %v1296 = vadd.f32 %v1268, %v1281
    %v1297 = vadd.f32 %v1269, %v1285
    %v1298 = vadd.f32 %v1270, %v1281
    %v1299 = vadd.f32 %v1271, %v1285
    %v1300 = vadd.f32 %v1272, %v1281
    %v1301 = vadd.f32 %v1273, %v1285
    %v1302 = vadd.f32 %v1274, %v1281
    %v1303 = vadd.f32 %v1275, %v1285
    %v1304 = vmax.f32 %v1288, 0.0
    %v1305 = vmax.f32 %v1289, 0.0
    %v1306 = vmax.f32 %v1290, 0.0
    %v1307 = vmax.f32 %v1291, 0.0
    %v1308 = vmax.f32 %v1292, 0.0
    %v1309 = vmax.f32 %v1293, 0.0
    %v1310 = vmax.f32 %v1294, 0.0
    %v1311 = vmax.f32 %v1295, 0.0
    %v1312 = vmax.f32 %v1296, 0.0
    %v1313 = vmax.f32 %v1297, 0.0
    %v1314 = vmax.f32 %v1298, 0.0
    %v1315 = vmax.f32 %v1299, 0.0
    %v1316 = vmax.f32 %v1300, 0.0
    %v1317 = vmax.f32 %v1301, 0.0
    %v1318 = vmax.f32 %v1302, 0.0
    %v1319 = vmax.f32 %v1303, 0.0
    %v1320 = vsub.f32 %v1304, %v1305
    %v1321 = vsub.f32 %v1306, %v1307
    %v1322 = vsub.f32 %v1308, %v1309
    %v1323 = vsub.f32 %v1310, %v1311
    %v1324 = vsub.f32 %v1312, %v1313
    %v1325 = vsub.f32 %v1314, %v1315
    %v1326 = vsub.f32 %v1316, %v1317
    %v1327 = vsub.f32 %v1318, %v1319
    %v1328 = vld [vmem:[#allocation7] sm:$0xff]
    %v1329 = vld [vmem:[#allocation7 + $0x8] sm:$0xff]
    %v1330 = vld [vmem:[#allocation7 + $0x10] sm:$0xff]
    %v1331 = vld [vmem:[#allocation7 + $0x18] sm:$0xff]
    %v1332 = vld [vmem:[#allocation7 + $0x20] sm:$0xff]
    %v1333 = vld [vmem:[#allocation7 + $0x28] sm:$0xff]
    %v1334 = vld [vmem:[#allocation7 + $0x30] sm:$0xff]
    %v1335 = vld [vmem:[#allocation7 + $0x38] sm:$0xff]
    %v1336 = vadd.f32 %v1320, %v1328
    %v1337 = vadd.f32 %v1321, %v1329
    %v1338 = vadd.f32 %v1322, %v1330
    %v1339 = vadd.f32 %v1323, %v1331
    %v1340 = vadd.f32 %v1324, %v1332
    %v1341 = vadd.f32 %v1325, %v1333
    %v1342 = vadd.f32 %v1326, %v1334
    %v1343 = vadd.f32 %v1327, %v1335
    %v1344 = vmul.f32 %v1336, 1.4285715
    %v1345 = vmul.f32 %v1337, 1.4285715
    %v1346 = vmul.f32 %v1338, 1.4285715
    %v1347 = vmul.f32 %v1339, 1.4285715
    %v1348 = vmul.f32 %v1340, 1.4285715
    %v1349 = vmul.f32 %v1341, 1.4285715
    %v1350 = vmul.f32 %v1342, 1.4285715
    %v1351 = vmul.f32 %v1343, 1.4285715
    %v1352 = vand.u32 2147483647, %v1344
    %v1353 = vand.u32 2147483647, %v1345
    %v1354 = vand.u32 2147483647, %v1346
    %v1355 = vand.u32 2147483647, %v1347
    %v1356 = vand.u32 2147483647, %v1348
    %v1357 = vand.u32 2147483647, %v1349
    %v1358 = vand.u32 2147483647, %v1350
    %v1359 = vand.u32 2147483647, %v1351
    %v1360 = vsub.f32 0.0, %v1352
    %v1361 = vsub.f32 0.0, %v1353
    %v1362 = vsub.f32 0.0, %v1354
    %v1363 = vsub.f32 0.0, %v1355
    %v1364 = vsub.f32 0.0, %v1356
    %v1365 = vsub.f32 0.0, %v1357
    %v1366 = vsub.f32 0.0, %v1358
    %v1367 = vsub.f32 0.0, %v1359
    %v1368 = vmul.f32 %v1360, 1.442695
    %v1369 = vpow.pop %v1368
    %v1370 = vmul.f32 %v1361, 1.442695
    %v1371 = vpow.pop %v1370
    %v1372 = vmul.f32 %v1362, 1.442695
    %v1373 = vpow.pop %v1372
    %v1374 = vmul.f32 %v1363, 1.442695
    %v1375 = vpow.pop %v1374
    %v1376 = vmul.f32 %v1364, 1.442695
    %v1377 = vpow.pop %v1376
    %v1378 = vmul.f32 %v1365, 1.442695
    %v1379 = vpow.pop %v1378
    %v1380 = vmul.f32 %v1366, 1.442695
    %v1381 = vpow.pop %v1380
    %v1382 = vmul.f32 %v1367, 1.442695
    %v1383 = vpow.pop %v1382
    %vm1384 = vcmp.ge.f32.partialorder %v1344, 0.0
    %vm1385 = vcmp.ge.f32.partialorder %v1345, 0.0
    %vm1386 = vcmp.ge.f32.partialorder %v1346, 0.0
    %vm1387 = vcmp.ge.f32.partialorder %v1347, 0.0
    %vm1388 = vcmp.ge.f32.partialorder %v1348, 0.0
    %vm1389 = vcmp.ge.f32.partialorder %v1349, 0.0
    %vm1390 = vcmp.ge.f32.partialorder %v1350, 0.0
    %vm1391 = vcmp.ge.f32.partialorder %v1351, 0.0
    %v1392 = vsel %vm1384, 1.0, %v1369
    %v1393 = vsel %vm1385, 1.0, %v1371
    %v1394 = vsel %vm1386, 1.0, %v1373
    %v1395 = vsel %vm1387, 1.0, %v1375
    %v1396 = vsel %vm1388, 1.0, %v1377
    %v1397 = vsel %vm1389, 1.0, %v1379
    %v1398 = vsel %vm1390, 1.0, %v1381
    %v1399 = vsel %vm1391, 1.0, %v1383
    %v1400 = vadd.f32 %v1369, 1.0
    %v1401 = vadd.f32 %v1371, 1.0
    %v1402 = vadd.f32 %v1373, 1.0
    %v1403 = vadd.f32 %v1375, 1.0
    %v1404 = vadd.f32 %v1377, 1.0
    %v1405 = vadd.f32 %v1379, 1.0
    %v1406 = vadd.f32 %v1381, 1.0
    %v1407 = vadd.f32 %v1383, 1.0
    %v1408 = vrcp.pop %v1400
    %v1409 = vmul.f32 %v1392, %v1408
    %v1410 = vrcp.pop %v1401
    %v1411 = vmul.f32 %v1393, %v1410
    %v1412 = vrcp.pop %v1402
    %v1413 = vmul.f32 %v1394, %v1412
    %v1414 = vrcp.pop %v1403
    %v1415 = vmul.f32 %v1395, %v1414
    %v1416 = vrcp.pop %v1404
    %v1417 = vmul.f32 %v1396, %v1416
    %v1418 = vrcp.pop %v1405
    %v1419 = vmul.f32 %v1397, %v1418
    %v1420 = vrcp.pop %v1406
    %v1421 = vmul.f32 %v1398, %v1420
    %v1422 = vrcp.pop %v1407
    %v1423 = vmul.f32 %v1399, %v1422
    %v1424 = vsub.f32 1.0, %v1409
    %v1425 = vsub.f32 1.0, %v1411
    %v1426 = vsub.f32 1.0, %v1413
    %v1427 = vsub.f32 1.0, %v1415
    %v1428 = vsub.f32 1.0, %v1417
    %v1429 = vsub.f32 1.0, %v1419
    %v1430 = vsub.f32 1.0, %v1421
    %v1431 = vsub.f32 1.0, %v1423
    %1432 = vst [vmem:[#allocation8] sm:$0xff] %v1409
    %1433 = vst [vmem:[#allocation8 + $0x8] sm:$0xff] %v1411
    %1434 = vst [vmem:[#allocation8 + $0x10] sm:$0xff] %v1413
    %1435 = vst [vmem:[#allocation8 + $0x18] sm:$0xff] %v1415
    %1436 = vst [vmem:[#allocation8 + $0x20] sm:$0xff] %v1417
    %1437 = vst [vmem:[#allocation8 + $0x28] sm:$0xff] %v1419
    %1438 = vst [vmem:[#allocation8 + $0x30] sm:$0xff] %v1421
    %1439 = vst [vmem:[#allocation8 + $0x38] sm:$0xff] %v1423
    %1440 = vst [vmem:[#allocation9] sm:$0xff] %v1424
    %1441 = vst [vmem:[#allocation9 + $0x8] sm:$0xff] %v1425
    %1442 = vst [vmem:[#allocation9 + $0x10] sm:$0xff] %v1426
    %1443 = vst [vmem:[#allocation9 + $0x18] sm:$0xff] %v1427
    %1444 = vst [vmem:[#allocation9 + $0x20] sm:$0xff] %v1428
    %1445 = vst [vmem:[#allocation9 + $0x28] sm:$0xff] %v1429
    %1446 = vst [vmem:[#allocation9 + $0x30] sm:$0xff] %v1430
    %1447 = vst [vmem:[#allocation9 + $0x38] sm:$0xff] %v1431
    // Predicated region
    $region38: #{tpu_custom_call.1} parent=1 // pred_check
      _
    $region39: #{tpu_custom_call.1} parent=1 // pred_check_branch
      %1449 = sbr.rel (0) target = $region41
    $region40: #{tpu_custom_call.1} parent=1 // pred_region
      %s1451 = ssub.s32 1024, 1024
      %1452 = vsyncadd [#allocation4], %s1451
      %s1453 = sshll.u32 [#allocation8], 4
      %s1454 = int_to_ptr.vmem [resolvable:$true] %s1453
      %1459 = dma.vmem_to_hbm [thread:$0]  %s1454, 1024, %s6, [#allocation4], 128, 128, 8
    $region41: #{tpu_custom_call.1} parent=1 // pred_fallthru
      _
    // Predicated region
    $region42: #{tpu_custom_call.1} parent=1 // pred_check
      _
    $region43: #{tpu_custom_call.1} parent=1 // pred_check_branch
      %1461 = sbr.rel (0) target = $region45
    $region44: #{tpu_custom_call.1} parent=1 // pred_region
      %s1463 = ssub.s32 1024, 1024
      %1464 = vsyncadd [#allocation10], %s1463
      %s1465 = sshll.u32 [#allocation9], 4
      %s1466 = int_to_ptr.vmem [resolvable:$true] %s1465
      %1471 = dma.vmem_to_hbm [thread:$0]  %s1466, 1024, %s7, [#allocation10], 128, 128, 8
    $region45: #{tpu_custom_call.1} parent=1 // pred_fallthru
      _
    // Predicated region
    $region46: #{tpu_custom_call.1} parent=1 // pred_check
      _
    $region47: #{tpu_custom_call.1} parent=1 // pred_check_branch
      %1473 = sbr.rel (0) target = $region49
    $region48: #{tpu_custom_call.1} parent=1 // pred_region
      %1474 = dma.done [#allocation4], 1024
    $region49: #{tpu_custom_call.1} parent=1 // pred_fallthru
      _
    // Predicated region
    $region50: #{tpu_custom_call.1} parent=1 // pred_check
      _
    $region51: #{tpu_custom_call.1} parent=1 // pred_check_branch
      %1476 = sbr.rel (0) target = $region53
    $region52: #{tpu_custom_call.1} parent=1 // pred_region
      %1477 = dma.done [#allocation10], 1024
    $region53: #{tpu_custom_call.1} parent=1 // pred_fallthru
      _
    %1478 = vsyncpa [#allocation3], 1
    %1479 = vsyncpa [#allocation6], 1
    %1480 = vsyncpa [#allocation4], 1
    %1481 = vsyncpa [#allocation10], 1

</llo_original>
